<compile_context>
chip_gen: v7x
topology: tpu7x:2x2x1
jax: 0.10.0
libtpu: 0.0.40
codegen_flags: <defaults>
</compile_context>

<pallas_src>
import functools
import numpy as np
import jax
import jax.numpy as jnp
from jax.experimental import pallas as pl
from jax.experimental.pallas import tpu as pltpu

_SMALL = 1e-20
_NEG_BIG = -1e30


def _topk_sinkhorn_kernel(scale_ref, scores_ref, topk_ref, w2_ref, w1g_ref,
                          a_ref, ssq_ref,
                          *, n, n_pad, k, rank, tau, max_iter, unroll):
    k1 = k + 1
    inv_ce_scale = scale_ref[0, 0]              # 1 / (C.max() * epsilon), SMEM scalar
    scores = scores_ref[...]                    # [bt, n_pad]  (items on lanes)
    bt = scores.shape[0]
    padded = (n_pad != n)

    if padded:
        lane = jax.lax.broadcasted_iota(jnp.int32, (1, n_pad), 1)
        lane_valid = lane < n
        lane_maskf = lane_valid.astype(jnp.float32)              # 1 on real items
        neg_bias = jnp.where(lane_valid, 0.0, _NEG_BIG)          # kills padded lanes
    else:
        lane_maskf = None
        neg_bias = None

    # ---- Ce[c] = (scores - anchor_c)^2 / (C.max * eps), anchor_c = k - c ----
    Ce = []
    for c in range(k1):
        d = scores - float(k - c)
        Ce.append(d * d * inv_ce_scale)

    # ---- Gamma0 warm-start transport plan: k+1 slabs of [bt, n_pad] ----
    def make_gamma0():
        g0 = []
        rowsum = None
        for c in range(k):
            tv = topk_ref[:, c:c + 1]                            # [bt, 1]
            raw = jax.nn.sigmoid(-jnp.abs(tv - scores) / tau) + _SMALL
            if padded:
                colsum = jnp.sum(raw * lane_maskf, axis=1, keepdims=True)
            else:
                colsum = jnp.sum(raw, axis=1, keepdims=True)
            g = raw / colsum * (1.0 / n)
            g0.append(g)
            rowsum = g if rowsum is None else rowsum + g
        last = jnp.clip(1.0 / n - rowsum, _SMALL, 1.0 - _SMALL)
        g0.append(last)
        return g0

    # ---- rank-`rank` pseudo-inverse warm start for the eps-scaled column dual ge ----
    # (the torch reference overwrites f on the first iteration, so only g matters)
    gamma0 = make_gamma0()
    Be = [Ce[c] + jnp.log(gamma0[c]) for c in range(k1)]   # = (C_norm + eps*log G0) / eps
    tr = []
    for r in range(rank):
        acc = None
        for c in range(k1):
            t = Be[c] * w2_ref[r * k1 + c:r * k1 + c + 1, :]     # padded cols of w2 are 0
            acc = t if acc is None else acc + t
        tr.append(jnp.sum(acc, axis=1, keepdims=True))           # [bt, 1]
    ge0 = []
    for c in range(k1):                                          # last column of w1g is 0
        acc = None
        for r in range(rank):
            t = tr[r] * w1g_ref[r, c]
            acc = t if acc is None else acc + t
        ge0.append(acc)                                          # [bt, 1]

    # ---- Sinkhorn hot loop (eps-scaled duals; log_mu / log_nu are Python scalars) ----
    log_mu = float(-np.log(n))
    log_nu = [float(np.log(1.0 / n))] * k + [float(np.log((n - k) / n))]

    def one_iter(fe, ge):
        # row dual: logsumexp over the k+1 anchors (unrolled leading axis -> VPU/EUP)
        z = [ge[c] - Ce[c] for c in range(k1)]
        m = z[0]
        for c in range(1, k1):
            m = jnp.maximum(m, z[c])
        s = jnp.exp(z[0] - m)
        for c in range(1, k1):
            s = s + jnp.exp(z[c] - m)
        fe = log_mu - m - jnp.log(s)
        if padded:
            fe = fe + neg_bias                                   # padded lanes -> -1e30
        # column duals: logsumexp over n (one XLU lane reduce per anchor)
        ge_new = []
        for c in range(k1):
            zc = fe - Ce[c]
            mc = jnp.max(zc, axis=1, keepdims=True)
            sc = jnp.sum(jnp.exp(zc - mc), axis=1, keepdims=True)
            ge_new.append(log_nu[c] - mc - jnp.log(sc))
        return fe, tuple(ge_new)

    u = max(1, int(unroll))
    main_iters = max_iter // u
    rem = max_iter - main_iters * u

    def body(_, carry):                                          # partially unrolled body
        fe, ge = carry
        for _i in range(u):
            fe, ge = one_iter(fe, ge)
        return fe, ge

    fe = jnp.zeros((bt, n_pad), jnp.float32)
    ge = tuple(ge0)
    if main_iters:
        fe, ge = jax.lax.fori_loop(0, main_iters, body, (fe, ge))
    for _i in range(rem):
        fe, ge = one_iter(fe, ge)

    # ---- epilogue: Gamma, module output A = Gamma[:, :, :k] * n, ||Gamma - Gamma0||^2 ----
    gamma = [jnp.exp(fe + ge[c] - Ce[c]) for c in range(k1)]
    for c in range(k):
        a_ref[c, :, :] = gamma[c] * float(n)      # lane-dense, unmasked stores

    gamma0 = make_gamma0()                        # recomputed: not live across the loop
    ssq = None
    for c in range(k1):
        d = gamma[c] - gamma0[c]
        if padded:
            d = d * lane_maskf
        sq = jnp.sum(d * d, axis=1, keepdims=True)
        ssq = sq if ssq is None else ssq + sq
    ssq_ref[...] = ssq                            # [bt, 1] partial sum of squares


def build_pinv_weights(k, n, rank=5):
    """Deterministic re-creation of the module's sparse-SVD warm-start weights (numpy SVD)."""
    assert rank <= n
    k1 = k + 1
    A = np.zeros((n * k1, n + k1), dtype=np.float64)
    for i in range(n):
        for c in range(k1):
            r = i * k1 + c
            A[r, i] = 1.0
            A[r, n + c] = 1.0
    A = A[:, :-1]                                      # (n*(k+1), n+k)
    u, s, vt = np.linalg.svd(A, full_matrices=False)   # descending singular values
    u_r, s_r, vt_r = u[:, :rank], s[:rank], vt[:rank, :]
    weight1 = (vt_r.T / s_r[None, :]).astype(np.float32)   # (n+k, rank)  = V_r S_r^-1
    weight2 = u_r.T.astype(np.float32)                      # (rank, n*(k+1)) = U_r^T
    return weight1, weight2


def _pick_block_bs(bs, n_pad, k, vmem_budget_bytes):
    """Largest divisor of bs that (a) keeps the per-step live set under the budget,
    (b) is sublane-aligned (multiple of 8) or covers the whole batch, and
    (c) prefers >= 2 grid steps so v7x's two TensorCores both get work."""
    k1 = k + 1
    per_item = (4 * k1 + 2 * k + 6) * n_pad * 4   # live f32 [n_pad] rows per batch item
    cap = max(1, int(vmem_budget_bytes) // per_item)
    cands = [d for d in range(1, bs + 1)
             if bs % d == 0 and d <= cap and (d % 8 == 0 or d == bs)]
    if not cands:   # fallback: any divisor that fits (layout-suboptimal but safe)
        cands = [d for d in range(1, bs + 1) if bs % d == 0 and d <= cap]
    split = [d for d in cands if bs // d >= 2]
    pool = split if split else cands
    return max(pool)


def topk_custom2_forward(scores, *, k, epsilon=0.1, max_iter=200, tau=0.1,
                         weight1, weight2, rank=5, block_bs=None, unroll=8):
    """Forward of TopK_custom2_w_initial.  Returns (A=[bs,n,k], ||Gamma-Gamma0||_F).

    Precondition (same as the torch module): every batch row has at least one finite
    score (a fully -inf row produces inf/NaN, exactly as in the reference)."""
    bs, n = scores.shape
    k1 = k + 1
    assert n > k, "need n > k"
    n_pad = ((n + 127) // 128) * 128
    scores = scores.astype(jnp.float32)

    # ----- -inf masking glue (matches torch pre-processing) -----
    neg_mask = jnp.isneginf(scores)
    max_s = jnp.max(scores)
    min_s = jnp.min(jnp.where(neg_mask, jnp.inf, scores))
    filled = min_s - (max_s - min_s)
    scores_m = jnp.where(neg_mask, filled, scores)                # [bs, n]

    # TODO(synk): torch.topk has no clean in-kernel Pallas equivalent; lax.top_k in glue.
    topk_vals, _ = jax.lax.top_k(scores_m, k)                     # [bs, k], descending

    # global C.max(): (s - a)^2 is convex in a over anchors {0..k} -> max at a=0 or a=k
    cmax = jnp.maximum(jnp.max(scores_m * scores_m),
                       jnp.max((scores_m - float(k)) ** 2))
    cmax = jnp.maximum(cmax, 1e-30)                               # guard: C identically 0
    inv_ce_scale = (1.0 / (cmax * float(epsilon))).reshape(1, 1).astype(jnp.float32)

    # lane-dense item axis: pad n up to a multiple of 128 (masked inside the kernel)
    scores_p = scores_m if n_pad == n else jnp.pad(scores_m, ((0, 0), (0, n_pad - n)))

    # ----- pseudo-inverse weights repacked to the anchor-major, lane=n layout -----
    w1 = np.asarray(weight1, np.float32)                          # (n+k, rank)
    w2 = np.asarray(weight2, np.float32)                          # (rank, n*(k+1))
    w2p = np.zeros((rank * k1, n_pad), np.float32)                # row r*k1+c, padded cols 0
    w2p[:, :n] = np.transpose(w2.reshape(rank, n, k1), (0, 2, 1)).reshape(rank * k1, n)
    w1g = np.zeros((rank, k1), np.float32)                        # last column stays 0
    w1g[:, :k] = w1[n:, :].T
    w2p = jnp.asarray(w2p)
    w1g = jnp.asarray(w1g)

    # ----- generation-aware VMEM budget -----
    try:
        vmem_cap = int(pltpu.get_tpu_info().vmem_capacity_bytes)
    except Exception:
        vmem_cap = 64 * 1024 * 1024
    if vmem_cap <= 64 * 1024 * 1024:            # v7x-class parts: stay well under 64 MiB
        vmem_limit = 32 * 1024 * 1024
    else:                                       # v5e / v6e (128 MiB): bigger batch tiles
        vmem_limit = min(96 * 1024 * 1024, vmem_cap // 2)
    fixed = 2 * (rank * k1 + 8) * n_pad * 4 + (2 << 20)   # double-buffered weights + slack
    budget = max(1 << 20, vmem_limit - fixed)

    if block_bs is None:
        block_bs = _pick_block_bs(bs, n_pad, k, budget)
    assert bs % block_bs == 0, "block_bs must divide the batch size"
    nb = bs // block_bs

    kernel = functools.partial(_topk_sinkhorn_kernel, n=n, n_pad=n_pad, k=k, rank=rank,
                               tau=float(tau), max_iter=int(max_iter), unroll=int(unroll))

    a_knl, ssq = pl.pallas_call(
        kernel,
        out_shape=(jax.ShapeDtypeStruct((k, bs, n_pad), jnp.float32),  # A, anchor-major
                   jax.ShapeDtypeStruct((bs, 1), jnp.float32)),        # partial ||.||^2
        grid=(nb,),
        in_specs=[
            pl.BlockSpec(memory_space=pltpu.MemorySpace.SMEM),         # 1/(cmax*eps)
            pl.BlockSpec((block_bs, n_pad), lambda b: (b, 0)),         # scores (padded)
            pl.BlockSpec((block_bs, k), lambda b: (b, 0)),             # top-k values
            pl.BlockSpec((rank * k1, n_pad), lambda b: (0, 0)),        # weight2 (repacked)
            pl.BlockSpec(memory_space=pltpu.MemorySpace.SMEM),         # weight1 g-part
        ],
        out_specs=(
            pl.BlockSpec((k, block_bs, n_pad), lambda b: (0, b, 0)),
            pl.BlockSpec((block_bs, 1), lambda b: (b, 0)),
        ),
        compiler_params=pltpu.CompilerParams(
            dimension_semantics=("parallel",),
            vmem_limit_bytes=int(vmem_limit)),
    )(inv_ce_scale, scores_p, topk_vals, w2p, w1g)

    A = jnp.transpose(a_knl, (1, 2, 0))[:, :n, :]                 # [bs, n, k]
    norm = jnp.sqrt(jnp.sum(ssq))                                 # global Frobenius norm
    return A, norm


if __name__ == "__main__":
    # Small shapes consistent with the module: batch=2 rows of n=16 scores, k=3.
    k, n, bs = 3, 16, 2
    key = jax.random.PRNGKey(0)
    scores = jax.random.normal(key, (bs, n), dtype=jnp.float32)

    weight1, weight2 = build_pinv_weights(k, n, rank=5)
    A, gnorm = topk_custom2_forward(scores, k=k, epsilon=0.1, max_iter=200,
                                    tau=0.1, weight1=weight1, weight2=weight2, rank=5)
    jax.block_until_ready((A, gnorm))

    assert A.shape == (bs, n, k)
    assert bool(jnp.isfinite(gnorm)) and bool(jnp.all(jnp.isfinite(A)))
    # after the final column update the column marginals are exact: sum_i A[b,i,c] == 1
    col_mass = jnp.sum(A, axis=1)
    assert bool(jnp.all(jnp.abs(col_mass - 1.0) < 5e-3))
    print("KERNEL_OK")
</pallas_src>

<mosaic_0001>
module attributes {stable_mosaic.version = 11 : i64} {
  func.func @_topk_sinkhorn_kernel(%arg0: i32, %arg1: memref<1x1xf32, #tpu.memory_space<smem>>, %arg2: memref<2x128xf32, #tpu.memory_space<vmem>>, %arg3: memref<2x3xf32, #tpu.memory_space<vmem>>, %arg4: memref<20x128xf32, #tpu.memory_space<vmem>>, %arg5: memref<5x4xf32, #tpu.memory_space<smem>>, %arg6: memref<3x2x128xf32, #tpu.memory_space<vmem>>, %arg7: memref<2x1xf32, #tpu.memory_space<vmem>>) attributes {dimension_semantics = [#tpu.dimension_semantics<parallel>], iteration_bounds = array<i64: 1>, scalar_prefetch = 0 : i64, scratch_operands = 0 : i64, tpu.core_type = #tpu.core_type<tc>, window_params = [{transform_indices = @transform_0, window_bounds = array<i64: 1, 1>}, {transform_indices = @transform_1, window_bounds = array<i64: 2, 128>}, {transform_indices = @transform_2, window_bounds = array<i64: 2, 3>}, {pipeline_mode = #tpu.pipeline_mode<synchronous>, transform_indices = @transform_3, window_bounds = array<i64: 20, 128>}, {transform_indices = @transform_4, window_bounds = array<i64: 5, 4>}, {transform_indices = @transform_5, window_bounds = array<i64: 3, 2, 128>}, {transform_indices = @transform_6, window_bounds = array<i64: 2, 1>}]} {
    %c0 = arith.constant 0 : index
    %c0_0 = arith.constant 0 : index
    %0 = memref.load %arg1[%c0, %c0_0] : memref<1x1xf32, #tpu.memory_space<smem>>
    %c0_1 = arith.constant 0 : index
    %c0_2 = arith.constant 0 : index
    %1 = vector.load %arg2[%c0_1, %c0_2] : memref<2x128xf32, #tpu.memory_space<vmem>>, vector<2x128xf32>
    %2 = tpu.iota {dimensions = array<i32: 1>} : vector<1x128xi32>
    %c16_i32 = arith.constant 16 : i32
    %3 = vector.broadcast %c16_i32 : i32 to vector<1x128xi32>
    %4 = arith.cmpi slt, %2, %3 : vector<1x128xi32>
    %5 = arith.extui %4 : vector<1x128xi1> to vector<1x128xi32>
    %6 = arith.sitofp %5 : vector<1x128xi32> to vector<1x128xf32>
    %cst = arith.constant 0.000000e+00 : f32
    %cst_3 = arith.constant -1.000000e+30 : f32
    %7 = vector.broadcast %cst : f32 to vector<1x128xf32>
    %8 = vector.broadcast %cst_3 : f32 to vector<1x128xf32>
    %9 = arith.select %4, %7, %8 : vector<1x128xi1>, vector<1x128xf32>
    %cst_4 = arith.constant 3.000000e+00 : f32
    %10 = vector.broadcast %cst_4 : f32 to vector<2x128xf32>
    %11 = arith.subf %1, %10 : vector<2x128xf32>
    %12 = arith.mulf %11, %11 : vector<2x128xf32>
    %13 = vector.broadcast %0 : f32 to vector<2x128xf32>
    %14 = arith.mulf %12, %13 : vector<2x128xf32>
    %cst_5 = arith.constant 2.000000e+00 : f32
    %15 = vector.broadcast %cst_5 : f32 to vector<2x128xf32>
    %16 = arith.subf %1, %15 : vector<2x128xf32>
    %17 = arith.mulf %16, %16 : vector<2x128xf32>
    %18 = vector.broadcast %0 : f32 to vector<2x128xf32>
    %19 = arith.mulf %17, %18 : vector<2x128xf32>
    %cst_6 = arith.constant 1.000000e+00 : f32
    %20 = vector.broadcast %cst_6 : f32 to vector<2x128xf32>
    %21 = arith.subf %1, %20 : vector<2x128xf32>
    %22 = arith.mulf %21, %21 : vector<2x128xf32>
    %23 = vector.broadcast %0 : f32 to vector<2x128xf32>
    %24 = arith.mulf %22, %23 : vector<2x128xf32>
    %cst_7 = arith.constant 0.000000e+00 : f32
    %25 = vector.broadcast %cst_7 : f32 to vector<2x128xf32>
    %26 = arith.subf %1, %25 : vector<2x128xf32>
    %27 = arith.mulf %26, %26 : vector<2x128xf32>
    %28 = vector.broadcast %0 : f32 to vector<2x128xf32>
    %29 = arith.mulf %27, %28 : vector<2x128xf32>
    %c0_8 = arith.constant 0 : index
    %c0_9 = arith.constant 0 : index
    %30 = vector.load %arg3[%c0_8, %c0_9] : memref<2x3xf32, #tpu.memory_space<vmem>>, vector<2x1xf32>
    %31 = vector.broadcast %30 : vector<2x1xf32> to vector<2x128xf32>
    %32 = arith.subf %31, %1 : vector<2x128xf32>
    %33 = math.absf %32 : vector<2x128xf32>
    %cst_10 = arith.constant 0.000000e+00 : f32
    %34 = vector.broadcast %cst_10 : f32 to vector<2x128xf32>
    %35 = arith.subf %34, %33 : vector<2x128xf32>
    %cst_11 = arith.constant 1.000000e-01 : f32
    %36 = vector.broadcast %cst_11 : f32 to vector<2x128xf32>
    %37 = arith.divf %35, %36 : vector<2x128xf32>
    %38 = arith.negf %37 : vector<2x128xf32>
    %39 = math.exp %38 : vector<2x128xf32>
    %cst_12 = arith.constant 1.000000e+00 : f32
    %40 = vector.broadcast %cst_12 : f32 to vector<2x128xf32>
    %41 = arith.addf %40, %39 : vector<2x128xf32>
    %42 = arith.divf %40, %41 : vector<2x128xf32>
    %cst_13 = arith.constant 9.99999968E-21 : f32
    %43 = vector.broadcast %cst_13 : f32 to vector<2x128xf32>
    %44 = arith.addf %42, %43 : vector<2x128xf32>
    %45 = vector.broadcast %6 : vector<1x128xf32> to vector<2x128xf32>
    %46 = arith.mulf %44, %45 : vector<2x128xf32>
    %cst_14 = arith.constant dense<0.000000e+00> : vector<2xf32>
    %47 = vector.multi_reduction <add>, %46, %cst_14 [1] : vector<2x128xf32> to vector<2xf32>
    %48 = vector.shape_cast %47 : vector<2xf32> to vector<2x1xf32>
    %49 = vector.broadcast %48 : vector<2x1xf32> to vector<2x128xf32>
    %50 = arith.divf %44, %49 : vector<2x128xf32>
    %cst_15 = arith.constant 6.250000e-02 : f32
    %51 = vector.broadcast %cst_15 : f32 to vector<2x128xf32>
    %52 = arith.mulf %50, %51 : vector<2x128xf32>
    %c0_16 = arith.constant 0 : index
    %c1 = arith.constant 1 : index
    %53 = vector.load %arg3[%c0_16, %c1] : memref<2x3xf32, #tpu.memory_space<vmem>>, vector<2x1xf32>
    %54 = vector.broadcast %53 : vector<2x1xf32> to vector<2x128xf32>
    %55 = arith.subf %54, %1 : vector<2x128xf32>
    %56 = math.absf %55 : vector<2x128xf32>
    %cst_17 = arith.constant 0.000000e+00 : f32
    %57 = vector.broadcast %cst_17 : f32 to vector<2x128xf32>
    %58 = arith.subf %57, %56 : vector<2x128xf32>
    %cst_18 = arith.constant 1.000000e-01 : f32
    %59 = vector.broadcast %cst_18 : f32 to vector<2x128xf32>
    %60 = arith.divf %58, %59 : vector<2x128xf32>
    %61 = arith.negf %60 : vector<2x128xf32>
    %62 = math.exp %61 : vector<2x128xf32>
    %cst_19 = arith.constant 1.000000e+00 : f32
    %63 = vector.broadcast %cst_19 : f32 to vector<2x128xf32>
    %64 = arith.addf %63, %62 : vector<2x128xf32>
    %65 = arith.divf %63, %64 : vector<2x128xf32>
    %cst_20 = arith.constant 9.99999968E-21 : f32
    %66 = vector.broadcast %cst_20 : f32 to vector<2x128xf32>
    %67 = arith.addf %65, %66 : vector<2x128xf32>
    %68 = vector.broadcast %6 : vector<1x128xf32> to vector<2x128xf32>
    %69 = arith.mulf %67, %68 : vector<2x128xf32>
    %cst_21 = arith.constant dense<0.000000e+00> : vector<2xf32>
    %70 = vector.multi_reduction <add>, %69, %cst_21 [1] : vector<2x128xf32> to vector<2xf32>
    %71 = vector.shape_cast %70 : vector<2xf32> to vector<2x1xf32>
    %72 = vector.broadcast %71 : vector<2x1xf32> to vector<2x128xf32>
    %73 = arith.divf %67, %72 : vector<2x128xf32>
    %cst_22 = arith.constant 6.250000e-02 : f32
    %74 = vector.broadcast %cst_22 : f32 to vector<2x128xf32>
    %75 = arith.mulf %73, %74 : vector<2x128xf32>
    %76 = arith.addf %52, %75 : vector<2x128xf32>
    %c0_23 = arith.constant 0 : index
    %c2 = arith.constant 2 : index
    %77 = vector.load %arg3[%c0_23, %c2] : memref<2x3xf32, #tpu.memory_space<vmem>>, vector<2x1xf32>
    %78 = vector.broadcast %77 : vector<2x1xf32> to vector<2x128xf32>
    %79 = arith.subf %78, %1 : vector<2x128xf32>
    %80 = math.absf %79 : vector<2x128xf32>
    %cst_24 = arith.constant 0.000000e+00 : f32
    %81 = vector.broadcast %cst_24 : f32 to vector<2x128xf32>
    %82 = arith.subf %81, %80 : vector<2x128xf32>
    %cst_25 = arith.constant 1.000000e-01 : f32
    %83 = vector.broadcast %cst_25 : f32 to vector<2x128xf32>
    %84 = arith.divf %82, %83 : vector<2x128xf32>
    %85 = arith.negf %84 : vector<2x128xf32>
    %86 = math.exp %85 : vector<2x128xf32>
    %cst_26 = arith.constant 1.000000e+00 : f32
    %87 = vector.broadcast %cst_26 : f32 to vector<2x128xf32>
    %88 = arith.addf %87, %86 : vector<2x128xf32>
    %89 = arith.divf %87, %88 : vector<2x128xf32>
    %cst_27 = arith.constant 9.99999968E-21 : f32
    %90 = vector.broadcast %cst_27 : f32 to vector<2x128xf32>
    %91 = arith.addf %89, %90 : vector<2x128xf32>
    %92 = vector.broadcast %6 : vector<1x128xf32> to vector<2x128xf32>
    %93 = arith.mulf %91, %92 : vector<2x128xf32>
    %cst_28 = arith.constant dense<0.000000e+00> : vector<2xf32>
    %94 = vector.multi_reduction <add>, %93, %cst_28 [1] : vector<2x128xf32> to vector<2xf32>
    %95 = vector.shape_cast %94 : vector<2xf32> to vector<2x1xf32>
    %96 = vector.broadcast %95 : vector<2x1xf32> to vector<2x128xf32>
    %97 = arith.divf %91, %96 : vector<2x128xf32>
    %cst_29 = arith.constant 6.250000e-02 : f32
    %98 = vector.broadcast %cst_29 : f32 to vector<2x128xf32>
    %99 = arith.mulf %97, %98 : vector<2x128xf32>
    %100 = arith.addf %76, %99 : vector<2x128xf32>
    %cst_30 = arith.constant 6.250000e-02 : f32
    %101 = vector.broadcast %cst_30 : f32 to vector<2x128xf32>
    %102 = arith.subf %101, %100 : vector<2x128xf32>
    %cst_31 = arith.constant 9.99999968E-21 : f32
    %cst_32 = arith.constant 1.000000e+00 : f32
    %103 = vector.broadcast %cst_31 : f32 to vector<2x128xf32>
    %104 = arith.maximumf %103, %102 : vector<2x128xf32>
    %105 = vector.broadcast %cst_32 : f32 to vector<2x128xf32>
    %106 = arith.minimumf %105, %104 : vector<2x128xf32>
    %107 = math.log %52 : vector<2x128xf32>
    %108 = arith.addf %14, %107 : vector<2x128xf32>
    %109 = math.log %75 : vector<2x128xf32>
    %110 = arith.addf %19, %109 : vector<2x128xf32>
    %111 = math.log %99 : vector<2x128xf32>
    %112 = arith.addf %24, %111 : vector<2x128xf32>
    %113 = math.log %106 : vector<2x128xf32>
    %114 = arith.addf %29, %113 : vector<2x128xf32>
    %c0_33 = arith.constant 0 : index
    %c0_34 = arith.constant 0 : index
    %115 = vector.load %arg4[%c0_33, %c0_34] : memref<20x128xf32, #tpu.memory_space<vmem>>, vector<1x128xf32>
    %116 = vector.broadcast %115 : vector<1x128xf32> to vector<2x128xf32>
    %117 = arith.mulf %108, %116 : vector<2x128xf32>
    %c1_35 = arith.constant 1 : index
    %c0_36 = arith.constant 0 : index
    %118 = vector.load %arg4[%c1_35, %c0_36] : memref<20x128xf32, #tpu.memory_space<vmem>>, vector<1x128xf32>
    %119 = vector.broadcast %118 : vector<1x128xf32> to vector<2x128xf32>
    %120 = arith.mulf %110, %119 : vector<2x128xf32>
    %121 = arith.addf %117, %120 : vector<2x128xf32>
    %c2_37 = arith.constant 2 : index
    %c0_38 = arith.constant 0 : index
    %122 = vector.load %arg4[%c2_37, %c0_38] : memref<20x128xf32, #tpu.memory_space<vmem>>, vector<1x128xf32>
    %123 = vector.broadcast %122 : vector<1x128xf32> to vector<2x128xf32>
    %124 = arith.mulf %112, %123 : vector<2x128xf32>
    %125 = arith.addf %121, %124 : vector<2x128xf32>
    %c3 = arith.constant 3 : index
    %c0_39 = arith.constant 0 : index
    %126 = vector.load %arg4[%c3, %c0_39] : memref<20x128xf32, #tpu.memory_space<vmem>>, vector<1x128xf32>
    %127 = vector.broadcast %126 : vector<1x128xf32> to vector<2x128xf32>
    %128 = arith.mulf %114, %127 : vector<2x128xf32>
    %129 = arith.addf %125, %128 : vector<2x128xf32>
    %cst_40 = arith.constant dense<0.000000e+00> : vector<2xf32>
    %130 = vector.multi_reduction <add>, %129, %cst_40 [1] : vector<2x128xf32> to vector<2xf32>
    %131 = vector.shape_cast %130 : vector<2xf32> to vector<2x1xf32>
    %c4 = arith.constant 4 : index
    %c0_41 = arith.constant 0 : index
    %132 = vector.load %arg4[%c4, %c0_41] : memref<20x128xf32, #tpu.memory_space<vmem>>, vector<1x128xf32>
    %133 = vector.broadcast %132 : vector<1x128xf32> to vector<2x128xf32>
    %134 = arith.mulf %108, %133 : vector<2x128xf32>
    %c5 = arith.constant 5 : index
    %c0_42 = arith.constant 0 : index
    %135 = vector.load %arg4[%c5, %c0_42] : memref<20x128xf32, #tpu.memory_space<vmem>>, vector<1x128xf32>
    %136 = vector.broadcast %135 : vector<1x128xf32> to vector<2x128xf32>
    %137 = arith.mulf %110, %136 : vector<2x128xf32>
    %138 = arith.addf %134, %137 : vector<2x128xf32>
    %c6 = arith.constant 6 : index
    %c0_43 = arith.constant 0 : index
    %139 = vector.load %arg4[%c6, %c0_43] : memref<20x128xf32, #tpu.memory_space<vmem>>, vector<1x128xf32>
    %140 = vector.broadcast %139 : vector<1x128xf32> to vector<2x128xf32>
    %141 = arith.mulf %112, %140 : vector<2x128xf32>
    %142 = arith.addf %138, %141 : vector<2x128xf32>
    %c7 = arith.constant 7 : index
    %c0_44 = arith.constant 0 : index
    %143 = vector.load %arg4[%c7, %c0_44] : memref<20x128xf32, #tpu.memory_space<vmem>>, vector<1x128xf32>
    %144 = vector.broadcast %143 : vector<1x128xf32> to vector<2x128xf32>
    %145 = arith.mulf %114, %144 : vector<2x128xf32>
    %146 = arith.addf %142, %145 : vector<2x128xf32>
    %cst_45 = arith.constant dense<0.000000e+00> : vector<2xf32>
    %147 = vector.multi_reduction <add>, %146, %cst_45 [1] : vector<2x128xf32> to vector<2xf32>
    %148 = vector.shape_cast %147 : vector<2xf32> to vector<2x1xf32>
    %c8 = arith.constant 8 : index
    %c0_46 = arith.constant 0 : index
    %149 = vector.load %arg4[%c8, %c0_46] : memref<20x128xf32, #tpu.memory_space<vmem>>, vector<1x128xf32>
    %150 = vector.broadcast %149 : vector<1x128xf32> to vector<2x128xf32>
    %151 = arith.mulf %108, %150 : vector<2x128xf32>
    %c9 = arith.constant 9 : index
    %c0_47 = arith.constant 0 : index
    %152 = vector.load %arg4[%c9, %c0_47] : memref<20x128xf32, #tpu.memory_space<vmem>>, vector<1x128xf32>
    %153 = vector.broadcast %152 : vector<1x128xf32> to vector<2x128xf32>
    %154 = arith.mulf %110, %153 : vector<2x128xf32>
    %155 = arith.addf %151, %154 : vector<2x128xf32>
    %c10 = arith.constant 10 : index
    %c0_48 = arith.constant 0 : index
    %156 = vector.load %arg4[%c10, %c0_48] : memref<20x128xf32, #tpu.memory_space<vmem>>, vector<1x128xf32>
    %157 = vector.broadcast %156 : vector<1x128xf32> to vector<2x128xf32>
    %158 = arith.mulf %112, %157 : vector<2x128xf32>
    %159 = arith.addf %155, %158 : vector<2x128xf32>
    %c11 = arith.constant 11 : index
    %c0_49 = arith.constant 0 : index
    %160 = vector.load %arg4[%c11, %c0_49] : memref<20x128xf32, #tpu.memory_space<vmem>>, vector<1x128xf32>
    %161 = vector.broadcast %160 : vector<1x128xf32> to vector<2x128xf32>
    %162 = arith.mulf %114, %161 : vector<2x128xf32>
    %163 = arith.addf %159, %162 : vector<2x128xf32>
    %cst_50 = arith.constant dense<0.000000e+00> : vector<2xf32>
    %164 = vector.multi_reduction <add>, %163, %cst_50 [1] : vector<2x128xf32> to vector<2xf32>
    %165 = vector.shape_cast %164 : vector<2xf32> to vector<2x1xf32>
    %c12 = arith.constant 12 : index
    %c0_51 = arith.constant 0 : index
    %166 = vector.load %arg4[%c12, %c0_51] : memref<20x128xf32, #tpu.memory_space<vmem>>, vector<1x128xf32>
    %167 = vector.broadcast %166 : vector<1x128xf32> to vector<2x128xf32>
    %168 = arith.mulf %108, %167 : vector<2x128xf32>
    %c13 = arith.constant 13 : index
    %c0_52 = arith.constant 0 : index
    %169 = vector.load %arg4[%c13, %c0_52] : memref<20x128xf32, #tpu.memory_space<vmem>>, vector<1x128xf32>
    %170 = vector.broadcast %169 : vector<1x128xf32> to vector<2x128xf32>
    %171 = arith.mulf %110, %170 : vector<2x128xf32>
    %172 = arith.addf %168, %171 : vector<2x128xf32>
    %c14 = arith.constant 14 : index
    %c0_53 = arith.constant 0 : index
    %173 = vector.load %arg4[%c14, %c0_53] : memref<20x128xf32, #tpu.memory_space<vmem>>, vector<1x128xf32>
    %174 = vector.broadcast %173 : vector<1x128xf32> to vector<2x128xf32>
    %175 = arith.mulf %112, %174 : vector<2x128xf32>
    %176 = arith.addf %172, %175 : vector<2x128xf32>
    %c15 = arith.constant 15 : index
    %c0_54 = arith.constant 0 : index
    %177 = vector.load %arg4[%c15, %c0_54] : memref<20x128xf32, #tpu.memory_space<vmem>>, vector<1x128xf32>
    %178 = vector.broadcast %177 : vector<1x128xf32> to vector<2x128xf32>
    %179 = arith.mulf %114, %178 : vector<2x128xf32>
    %180 = arith.addf %176, %179 : vector<2x128xf32>
    %cst_55 = arith.constant dense<0.000000e+00> : vector<2xf32>
    %181 = vector.multi_reduction <add>, %180, %cst_55 [1] : vector<2x128xf32> to vector<2xf32>
    %182 = vector.shape_cast %181 : vector<2xf32> to vector<2x1xf32>
    %c16 = arith.constant 16 : index
    %c0_56 = arith.constant 0 : index
    %183 = vector.load %arg4[%c16, %c0_56] : memref<20x128xf32, #tpu.memory_space<vmem>>, vector<1x128xf32>
    %184 = vector.broadcast %183 : vector<1x128xf32> to vector<2x128xf32>
    %185 = arith.mulf %108, %184 : vector<2x128xf32>
    %c17 = arith.constant 17 : index
    %c0_57 = arith.constant 0 : index
    %186 = vector.load %arg4[%c17, %c0_57] : memref<20x128xf32, #tpu.memory_space<vmem>>, vector<1x128xf32>
    %187 = vector.broadcast %186 : vector<1x128xf32> to vector<2x128xf32>
    %188 = arith.mulf %110, %187 : vector<2x128xf32>
    %189 = arith.addf %185, %188 : vector<2x128xf32>
    %c18 = arith.constant 18 : index
    %c0_58 = arith.constant 0 : index
    %190 = vector.load %arg4[%c18, %c0_58] : memref<20x128xf32, #tpu.memory_space<vmem>>, vector<1x128xf32>
    %191 = vector.broadcast %190 : vector<1x128xf32> to vector<2x128xf32>
    %192 = arith.mulf %112, %191 : vector<2x128xf32>
    %193 = arith.addf %189, %192 : vector<2x128xf32>
    %c19 = arith.constant 19 : index
    %c0_59 = arith.constant 0 : index
    %194 = vector.load %arg4[%c19, %c0_59] : memref<20x128xf32, #tpu.memory_space<vmem>>, vector<1x128xf32>
    %195 = vector.broadcast %194 : vector<1x128xf32> to vector<2x128xf32>
    %196 = arith.mulf %114, %195 : vector<2x128xf32>
    %197 = arith.addf %193, %196 : vector<2x128xf32>
    %cst_60 = arith.constant dense<0.000000e+00> : vector<2xf32>
    %198 = vector.multi_reduction <add>, %197, %cst_60 [1] : vector<2x128xf32> to vector<2xf32>
    %199 = vector.shape_cast %198 : vector<2xf32> to vector<2x1xf32>
    %c0_61 = arith.constant 0 : index
    %c0_62 = arith.constant 0 : index
    %200 = memref.load %arg5[%c0_61, %c0_62] : memref<5x4xf32, #tpu.memory_space<smem>>
    %201 = vector.broadcast %200 : f32 to vector<2x1xf32>
    %202 = arith.mulf %131, %201 : vector<2x1xf32>
    %c1_63 = arith.constant 1 : index
    %c0_64 = arith.constant 0 : index
    %203 = memref.load %arg5[%c1_63, %c0_64] : memref<5x4xf32, #tpu.memory_space<smem>>
    %204 = vector.broadcast %203 : f32 to vector<2x1xf32>
    %205 = arith.mulf %148, %204 : vector<2x1xf32>
    %206 = arith.addf %202, %205 : vector<2x1xf32>
    %c2_65 = arith.constant 2 : index
    %c0_66 = arith.constant 0 : index
    %207 = memref.load %arg5[%c2_65, %c0_66] : memref<5x4xf32, #tpu.memory_space<smem>>
    %208 = vector.broadcast %207 : f32 to vector<2x1xf32>
    %209 = arith.mulf %165, %208 : vector<2x1xf32>
    %210 = arith.addf %206, %209 : vector<2x1xf32>
    %c3_67 = arith.constant 3 : index
    %c0_68 = arith.constant 0 : index
    %211 = memref.load %arg5[%c3_67, %c0_68] : memref<5x4xf32, #tpu.memory_space<smem>>
    %212 = vector.broadcast %211 : f32 to vector<2x1xf32>
    %213 = arith.mulf %182, %212 : vector<2x1xf32>
    %214 = arith.addf %210, %213 : vector<2x1xf32>
    %c4_69 = arith.constant 4 : index
    %c0_70 = arith.constant 0 : index
    %215 = memref.load %arg5[%c4_69, %c0_70] : memref<5x4xf32, #tpu.memory_space<smem>>
    %216 = vector.broadcast %215 : f32 to vector<2x1xf32>
    %217 = arith.mulf %199, %216 : vector<2x1xf32>
    %218 = arith.addf %214, %217 : vector<2x1xf32>
    %c0_71 = arith.constant 0 : index
    %c1_72 = arith.constant 1 : index
    %219 = memref.load %arg5[%c0_71, %c1_72] : memref<5x4xf32, #tpu.memory_space<smem>>
    %220 = vector.broadcast %219 : f32 to vector<2x1xf32>
    %221 = arith.mulf %131, %220 : vector<2x1xf32>
    %c1_73 = arith.constant 1 : index
    %c1_74 = arith.constant 1 : index
    %222 = memref.load %arg5[%c1_73, %c1_74] : memref<5x4xf32, #tpu.memory_space<smem>>
    %223 = vector.broadcast %222 : f32 to vector<2x1xf32>
    %224 = arith.mulf %148, %223 : vector<2x1xf32>
    %225 = arith.addf %221, %224 : vector<2x1xf32>
    %c2_75 = arith.constant 2 : index
    %c1_76 = arith.constant 1 : index
    %226 = memref.load %arg5[%c2_75, %c1_76] : memref<5x4xf32, #tpu.memory_space<smem>>
    %227 = vector.broadcast %226 : f32 to vector<2x1xf32>
    %228 = arith.mulf %165, %227 : vector<2x1xf32>
    %229 = arith.addf %225, %228 : vector<2x1xf32>
    %c3_77 = arith.constant 3 : index
    %c1_78 = arith.constant 1 : index
    %230 = memref.load %arg5[%c3_77, %c1_78] : memref<5x4xf32, #tpu.memory_space<smem>>
    %231 = vector.broadcast %230 : f32 to vector<2x1xf32>
    %232 = arith.mulf %182, %231 : vector<2x1xf32>
    %233 = arith.addf %229, %232 : vector<2x1xf32>
    %c4_79 = arith.constant 4 : index
    %c1_80 = arith.constant 1 : index
    %234 = memref.load %arg5[%c4_79, %c1_80] : memref<5x4xf32, #tpu.memory_space<smem>>
    %235 = vector.broadcast %234 : f32 to vector<2x1xf32>
    %236 = arith.mulf %199, %235 : vector<2x1xf32>
    %237 = arith.addf %233, %236 : vector<2x1xf32>
    %c0_81 = arith.constant 0 : index
    %c2_82 = arith.constant 2 : index
    %238 = memref.load %arg5[%c0_81, %c2_82] : memref<5x4xf32, #tpu.memory_space<smem>>
    %239 = vector.broadcast %238 : f32 to vector<2x1xf32>
    %240 = arith.mulf %131, %239 : vector<2x1xf32>
    %c1_83 = arith.constant 1 : index
    %c2_84 = arith.constant 2 : index
    %241 = memref.load %arg5[%c1_83, %c2_84] : memref<5x4xf32, #tpu.memory_space<smem>>
    %242 = vector.broadcast %241 : f32 to vector<2x1xf32>
    %243 = arith.mulf %148, %242 : vector<2x1xf32>
    %244 = arith.addf %240, %243 : vector<2x1xf32>
    %c2_85 = arith.constant 2 : index
    %c2_86 = arith.constant 2 : index
    %245 = memref.load %arg5[%c2_85, %c2_86] : memref<5x4xf32, #tpu.memory_space<smem>>
    %246 = vector.broadcast %245 : f32 to vector<2x1xf32>
    %247 = arith.mulf %165, %246 : vector<2x1xf32>
    %248 = arith.addf %244, %247 : vector<2x1xf32>
    %c3_87 = arith.constant 3 : index
    %c2_88 = arith.constant 2 : index
    %249 = memref.load %arg5[%c3_87, %c2_88] : memref<5x4xf32, #tpu.memory_space<smem>>
    %250 = vector.broadcast %249 : f32 to vector<2x1xf32>
    %251 = arith.mulf %182, %250 : vector<2x1xf32>
    %252 = arith.addf %248, %251 : vector<2x1xf32>
    %c4_89 = arith.constant 4 : index
    %c2_90 = arith.constant 2 : index
    %253 = memref.load %arg5[%c4_89, %c2_90] : memref<5x4xf32, #tpu.memory_space<smem>>
    %254 = vector.broadcast %253 : f32 to vector<2x1xf32>
    %255 = arith.mulf %199, %254 : vector<2x1xf32>
    %256 = arith.addf %252, %255 : vector<2x1xf32>
    %c0_91 = arith.constant 0 : index
    %c3_92 = arith.constant 3 : index
    %257 = memref.load %arg5[%c0_91, %c3_92] : memref<5x4xf32, #tpu.memory_space<smem>>
    %258 = vector.broadcast %257 : f32 to vector<2x1xf32>
    %259 = arith.mulf %131, %258 : vector<2x1xf32>
    %c1_93 = arith.constant 1 : index
    %c3_94 = arith.constant 3 : index
    %260 = memref.load %arg5[%c1_93, %c3_94] : memref<5x4xf32, #tpu.memory_space<smem>>
    %261 = vector.broadcast %260 : f32 to vector<2x1xf32>
    %262 = arith.mulf %148, %261 : vector<2x1xf32>
    %263 = arith.addf %259, %262 : vector<2x1xf32>
    %c2_95 = arith.constant 2 : index
    %c3_96 = arith.constant 3 : index
    %264 = memref.load %arg5[%c2_95, %c3_96] : memref<5x4xf32, #tpu.memory_space<smem>>
    %265 = vector.broadcast %264 : f32 to vector<2x1xf32>
    %266 = arith.mulf %165, %265 : vector<2x1xf32>
    %267 = arith.addf %263, %266 : vector<2x1xf32>
    %c3_97 = arith.constant 3 : index
    %c3_98 = arith.constant 3 : index
    %268 = memref.load %arg5[%c3_97, %c3_98] : memref<5x4xf32, #tpu.memory_space<smem>>
    %269 = vector.broadcast %268 : f32 to vector<2x1xf32>
    %270 = arith.mulf %182, %269 : vector<2x1xf32>
    %271 = arith.addf %267, %270 : vector<2x1xf32>
    %c4_99 = arith.constant 4 : index
    %c3_100 = arith.constant 3 : index
    %272 = memref.load %arg5[%c4_99, %c3_100] : memref<5x4xf32, #tpu.memory_space<smem>>
    %273 = vector.broadcast %272 : f32 to vector<2x1xf32>
    %274 = arith.mulf %199, %273 : vector<2x1xf32>
    %275 = arith.addf %271, %274 : vector<2x1xf32>
    %cst_101 = arith.constant 0.000000e+00 : f32
    %276 = vector.broadcast %cst_101 : f32 to vector<2x128xf32>
    %c0_i32 = arith.constant 0 : i32
    %c25_i32 = arith.constant 25 : i32
    %277 = arith.addi %c0_i32, %c25_i32 : i32
    %c1_i32 = arith.constant 1 : i32
    %278:5 = scf.for %arg8 = %c0_i32 to %277 step %c1_i32 iter_args(%arg9 = %276, %arg10 = %218, %arg11 = %237, %arg12 = %256, %arg13 = %275) -> (vector<2x128xf32>, vector<2x1xf32>, vector<2x1xf32>, vector<2x1xf32>, vector<2x1xf32>)  : i32 {
      %415 = vector.broadcast %arg10 : vector<2x1xf32> to vector<2x128xf32>
      %416 = arith.subf %415, %14 : vector<2x128xf32>
      %417 = vector.broadcast %arg11 : vector<2x1xf32> to vector<2x128xf32>
      %418 = arith.subf %417, %19 : vector<2x128xf32>
      %419 = vector.broadcast %arg12 : vector<2x1xf32> to vector<2x128xf32>
      %420 = arith.subf %419, %24 : vector<2x128xf32>
      %421 = vector.broadcast %arg13 : vector<2x1xf32> to vector<2x128xf32>
      %422 = arith.subf %421, %29 : vector<2x128xf32>
      %423 = arith.maximumf %416, %418 : vector<2x128xf32>
      %424 = arith.maximumf %423, %420 : vector<2x128xf32>
      %425 = arith.maximumf %424, %422 : vector<2x128xf32>
      %426 = arith.subf %416, %425 : vector<2x128xf32>
      %427 = math.exp %426 : vector<2x128xf32>
      %428 = arith.subf %418, %425 : vector<2x128xf32>
      %429 = math.exp %428 : vector<2x128xf32>
      %430 = arith.addf %427, %429 : vector<2x128xf32>
      %431 = arith.subf %420, %425 : vector<2x128xf32>
      %432 = math.exp %431 : vector<2x128xf32>
      %433 = arith.addf %430, %432 : vector<2x128xf32>
      %434 = arith.subf %422, %425 : vector<2x128xf32>
      %435 = math.exp %434 : vector<2x128xf32>
      %436 = arith.addf %433, %435 : vector<2x128xf32>
      %cst_147 = arith.constant -2.77258873 : f32
      %437 = vector.broadcast %cst_147 : f32 to vector<2x128xf32>
      %438 = arith.subf %437, %425 : vector<2x128xf32>
      %439 = math.log %436 : vector<2x128xf32>
      %440 = arith.subf %438, %439 : vector<2x128xf32>
      %441 = vector.broadcast %9 : vector<1x128xf32> to vector<2x128xf32>
      %442 = arith.addf %440, %441 : vector<2x128xf32>
      %443 = arith.subf %442, %14 : vector<2x128xf32>
      %cst_148 = arith.constant dense<0xFF800000> : vector<2xf32>
      %444 = vector.multi_reduction <maximumf>, %443, %cst_148 [1] : vector<2x128xf32> to vector<2xf32>
      %445 = vector.shape_cast %444 : vector<2xf32> to vector<2x1xf32>
      %446 = vector.broadcast %445 : vector<2x1xf32> to vector<2x128xf32>
      %447 = arith.subf %443, %446 : vector<2x128xf32>
      %448 = math.exp %447 : vector<2x128xf32>
      %cst_149 = arith.constant dense<0.000000e+00> : vector<2xf32>
      %449 = vector.multi_reduction <add>, %448, %cst_149 [1] : vector<2x128xf32> to vector<2xf32>
      %450 = vector.shape_cast %449 : vector<2xf32> to vector<2x1xf32>
      %cst_150 = arith.constant -2.77258873 : f32
      %451 = vector.broadcast %cst_150 : f32 to vector<2x1xf32>
      %452 = arith.subf %451, %445 : vector<2x1xf32>
      %453 = math.log %450 : vector<2x1xf32>
      %454 = arith.subf %452, %453 : vector<2x1xf32>
      %455 = arith.subf %442, %19 : vector<2x128xf32>
      %cst_151 = arith.constant dense<0xFF800000> : vector<2xf32>
      %456 = vector.multi_reduction <maximumf>, %455, %cst_151 [1] : vector<2x128xf32> to vector<2xf32>
      %457 = vector.shape_cast %456 : vector<2xf32> to vector<2x1xf32>
      %458 = vector.broadcast %457 : vector<2x1xf32> to vector<2x128xf32>
      %459 = arith.subf %455, %458 : vector<2x128xf32>
      %460 = math.exp %459 : vector<2x128xf32>
      %cst_152 = arith.constant dense<0.000000e+00> : vector<2xf32>
      %461 = vector.multi_reduction <add>, %460, %cst_152 [1] : vector<2x128xf32> to vector<2xf32>
      %462 = vector.shape_cast %461 : vector<2xf32> to vector<2x1xf32>
      %cst_153 = arith.constant -2.77258873 : f32
      %463 = vector.broadcast %cst_153 : f32 to vector<2x1xf32>
      %464 = arith.subf %463, %457 : vector<2x1xf32>
      %465 = math.log %462 : vector<2x1xf32>
      %466 = arith.subf %464, %465 : vector<2x1xf32>
      %467 = arith.subf %442, %24 : vector<2x128xf32>
      %cst_154 = arith.constant dense<0xFF800000> : vector<2xf32>
      %468 = vector.multi_reduction <maximumf>, %467, %cst_154 [1] : vector<2x128xf32> to vector<2xf32>
      %469 = vector.shape_cast %468 : vector<2xf32> to vector<2x1xf32>
      %470 = vector.broadcast %469 : vector<2x1xf32> to vector<2x128xf32>
      %471 = arith.subf %467, %470 : vector<2x128xf32>
      %472 = math.exp %471 : vector<2x128xf32>
      %cst_155 = arith.constant dense<0.000000e+00> : vector<2xf32>
      %473 = vector.multi_reduction <add>, %472, %cst_155 [1] : vector<2x128xf32> to vector<2xf32>
      %474 = vector.shape_cast %473 : vector<2xf32> to vector<2x1xf32>
      %cst_156 = arith.constant -2.77258873 : f32
      %475 = vector.broadcast %cst_156 : f32 to vector<2x1xf32>
      %476 = arith.subf %475, %469 : vector<2x1xf32>
      %477 = math.log %474 : vector<2x1xf32>
      %478 = arith.subf %476, %477 : vector<2x1xf32>
      %479 = arith.subf %442, %29 : vector<2x128xf32>
      %cst_157 = arith.constant dense<0xFF800000> : vector<2xf32>
      %480 = vector.multi_reduction <maximumf>, %479, %cst_157 [1] : vector<2x128xf32> to vector<2xf32>
      %481 = vector.shape_cast %480 : vector<2xf32> to vector<2x1xf32>
      %482 = vector.broadcast %481 : vector<2x1xf32> to vector<2x128xf32>
      %483 = arith.subf %479, %482 : vector<2x128xf32>
      %484 = math.exp %483 : vector<2x128xf32>
      %cst_158 = arith.constant dense<0.000000e+00> : vector<2xf32>
      %485 = vector.multi_reduction <add>, %484, %cst_158 [1] : vector<2x128xf32> to vector<2xf32>
      %486 = vector.shape_cast %485 : vector<2xf32> to vector<2x1xf32>
      %cst_159 = arith.constant -0.207639366 : f32
      %487 = vector.broadcast %cst_159 : f32 to vector<2x1xf32>
      %488 = arith.subf %487, %481 : vector<2x1xf32>
      %489 = math.log %486 : vector<2x1xf32>
      %490 = arith.subf %488, %489 : vector<2x1xf32>
      %491 = vector.broadcast %454 : vector<2x1xf32> to vector<2x128xf32>
      %492 = arith.subf %491, %14 : vector<2x128xf32>
      %493 = vector.broadcast %466 : vector<2x1xf32> to vector<2x128xf32>
      %494 = arith.subf %493, %19 : vector<2x128xf32>
      %495 = vector.broadcast %478 : vector<2x1xf32> to vector<2x128xf32>
      %496 = arith.subf %495, %24 : vector<2x128xf32>
      %497 = vector.broadcast %490 : vector<2x1xf32> to vector<2x128xf32>
      %498 = arith.subf %497, %29 : vector<2x128xf32>
      %499 = arith.maximumf %492, %494 : vector<2x128xf32>
      %500 = arith.maximumf %499, %496 : vector<2x128xf32>
      %501 = arith.maximumf %500, %498 : vector<2x128xf32>
      %502 = arith.subf %492, %501 : vector<2x128xf32>
      %503 = math.exp %502 : vector<2x128xf32>
      %504 = arith.subf %494, %501 : vector<2x128xf32>
      %505 = math.exp %504 : vector<2x128xf32>
      %506 = arith.addf %503, %505 : vector<2x128xf32>
      %507 = arith.subf %496, %501 : vector<2x128xf32>
      %508 = math.exp %507 : vector<2x128xf32>
      %509 = arith.addf %506, %508 : vector<2x128xf32>
      %510 = arith.subf %498, %501 : vector<2x128xf32>
      %511 = math.exp %510 : vector<2x128xf32>
      %512 = arith.addf %509, %511 : vector<2x128xf32>
      %cst_160 = arith.constant -2.77258873 : f32
      %513 = vector.broadcast %cst_160 : f32 to vector<2x128xf32>
      %514 = arith.subf %513, %501 : vector<2x128xf32>
      %515 = math.log %512 : vector<2x128xf32>
      %516 = arith.subf %514, %515 : vector<2x128xf32>
      %517 = vector.broadcast %9 : vector<1x128xf32> to vector<2x128xf32>
      %518 = arith.addf %516, %517 : vector<2x128xf32>
      %519 = arith.subf %518, %14 : vector<2x128xf32>
      %cst_161 = arith.constant dense<0xFF800000> : vector<2xf32>
      %520 = vector.multi_reduction <maximumf>, %519, %cst_161 [1] : vector<2x128xf32> to vector<2xf32>
      %521 = vector.shape_cast %520 : vector<2xf32> to vector<2x1xf32>
      %522 = vector.broadcast %521 : vector<2x1xf32> to vector<2x128xf32>
      %523 = arith.subf %519, %522 : vector<2x128xf32>
      %524 = math.exp %523 : vector<2x128xf32>
      %cst_162 = arith.constant dense<0.000000e+00> : vector<2xf32>
      %525 = vector.multi_reduction <add>, %524, %cst_162 [1] : vector<2x128xf32> to vector<2xf32>
      %526 = vector.shape_cast %525 : vector<2xf32> to vector<2x1xf32>
      %cst_163 = arith.constant -2.77258873 : f32
      %527 = vector.broadcast %cst_163 : f32 to vector<2x1xf32>
      %528 = arith.subf %527, %521 : vector<2x1xf32>
      %529 = math.log %526 : vector<2x1xf32>
      %530 = arith.subf %528, %529 : vector<2x1xf32>
      %531 = arith.subf %518, %19 : vector<2x128xf32>
      %cst_164 = arith.constant dense<0xFF800000> : vector<2xf32>
      %532 = vector.multi_reduction <maximumf>, %531, %cst_164 [1] : vector<2x128xf32> to vector<2xf32>
      %533 = vector.shape_cast %532 : vector<2xf32> to vector<2x1xf32>
      %534 = vector.broadcast %533 : vector<2x1xf32> to vector<2x128xf32>
      %535 = arith.subf %531, %534 : vector<2x128xf32>
      %536 = math.exp %535 : vector<2x128xf32>
      %cst_165 = arith.constant dense<0.000000e+00> : vector<2xf32>
      %537 = vector.multi_reduction <add>, %536, %cst_165 [1] : vector<2x128xf32> to vector<2xf32>
      %538 = vector.shape_cast %537 : vector<2xf32> to vector<2x1xf32>
      %cst_166 = arith.constant -2.77258873 : f32
      %539 = vector.broadcast %cst_166 : f32 to vector<2x1xf32>
      %540 = arith.subf %539, %533 : vector<2x1xf32>
      %541 = math.log %538 : vector<2x1xf32>
      %542 = arith.subf %540, %541 : vector<2x1xf32>
      %543 = arith.subf %518, %24 : vector<2x128xf32>
      %cst_167 = arith.constant dense<0xFF800000> : vector<2xf32>
      %544 = vector.multi_reduction <maximumf>, %543, %cst_167 [1] : vector<2x128xf32> to vector<2xf32>
      %545 = vector.shape_cast %544 : vector<2xf32> to vector<2x1xf32>
      %546 = vector.broadcast %545 : vector<2x1xf32> to vector<2x128xf32>
      %547 = arith.subf %543, %546 : vector<2x128xf32>
      %548 = math.exp %547 : vector<2x128xf32>
      %cst_168 = arith.constant dense<0.000000e+00> : vector<2xf32>
      %549 = vector.multi_reduction <add>, %548, %cst_168 [1] : vector<2x128xf32> to vector<2xf32>
      %550 = vector.shape_cast %549 : vector<2xf32> to vector<2x1xf32>
      %cst_169 = arith.constant -2.77258873 : f32
      %551 = vector.broadcast %cst_169 : f32 to vector<2x1xf32>
      %552 = arith.subf %551, %545 : vector<2x1xf32>
      %553 = math.log %550 : vector<2x1xf32>
      %554 = arith.subf %552, %553 : vector<2x1xf32>
      %555 = arith.subf %518, %29 : vector<2x128xf32>
      %cst_170 = arith.constant dense<0xFF800000> : vector<2xf32>
      %556 = vector.multi_reduction <maximumf>, %555, %cst_170 [1] : vector<2x128xf32> to vector<2xf32>
      %557 = vector.shape_cast %556 : vector<2xf32> to vector<2x1xf32>
      %558 = vector.broadcast %557 : vector<2x1xf32> to vector<2x128xf32>
      %559 = arith.subf %555, %558 : vector<2x128xf32>
      %560 = math.exp %559 : vector<2x128xf32>
      %cst_171 = arith.constant dense<0.000000e+00> : vector<2xf32>
      %561 = vector.multi_reduction <add>, %560, %cst_171 [1] : vector<2x128xf32> to vector<2xf32>
      %562 = vector.shape_cast %561 : vector<2xf32> to vector<2x1xf32>
      %cst_172 = arith.constant -0.207639366 : f32
      %563 = vector.broadcast %cst_172 : f32 to vector<2x1xf32>
      %564 = arith.subf %563, %557 : vector<2x1xf32>
      %565 = math.log %562 : vector<2x1xf32>
      %566 = arith.subf %564, %565 : vector<2x1xf32>
      %567 = vector.broadcast %530 : vector<2x1xf32> to vector<2x128xf32>
      %568 = arith.subf %567, %14 : vector<2x128xf32>
      %569 = vector.broadcast %542 : vector<2x1xf32> to vector<2x128xf32>
      %570 = arith.subf %569, %19 : vector<2x128xf32>
      %571 = vector.broadcast %554 : vector<2x1xf32> to vector<2x128xf32>
      %572 = arith.subf %571, %24 : vector<2x128xf32>
      %573 = vector.broadcast %566 : vector<2x1xf32> to vector<2x128xf32>
      %574 = arith.subf %573, %29 : vector<2x128xf32>
      %575 = arith.maximumf %568, %570 : vector<2x128xf32>
      %576 = arith.maximumf %575, %572 : vector<2x128xf32>
      %577 = arith.maximumf %576, %574 : vector<2x128xf32>
      %578 = arith.subf %568, %577 : vector<2x128xf32>
      %579 = math.exp %578 : vector<2x128xf32>
      %580 = arith.subf %570, %577 : vector<2x128xf32>
      %581 = math.exp %580 : vector<2x128xf32>
      %582 = arith.addf %579, %581 : vector<2x128xf32>
      %583 = arith.subf %572, %577 : vector<2x128xf32>
      %584 = math.exp %583 : vector<2x128xf32>
      %585 = arith.addf %582, %584 : vector<2x128xf32>
      %586 = arith.subf %574, %577 : vector<2x128xf32>
      %587 = math.exp %586 : vector<2x128xf32>
      %588 = arith.addf %585, %587 : vector<2x128xf32>
      %cst_173 = arith.constant -2.77258873 : f32
      %589 = vector.broadcast %cst_173 : f32 to vector<2x128xf32>
      %590 = arith.subf %589, %577 : vector<2x128xf32>
      %591 = math.log %588 : vector<2x128xf32>
      %592 = arith.subf %590, %591 : vector<2x128xf32>
      %593 = vector.broadcast %9 : vector<1x128xf32> to vector<2x128xf32>
      %594 = arith.addf %592, %593 : vector<2x128xf32>
      %595 = arith.subf %594, %14 : vector<2x128xf32>
      %cst_174 = arith.constant dense<0xFF800000> : vector<2xf32>
      %596 = vector.multi_reduction <maximumf>, %595, %cst_174 [1] : vector<2x128xf32> to vector<2xf32>
      %597 = vector.shape_cast %596 : vector<2xf32> to vector<2x1xf32>
      %598 = vector.broadcast %597 : vector<2x1xf32> to vector<2x128xf32>
      %599 = arith.subf %595, %598 : vector<2x128xf32>
      %600 = math.exp %599 : vector<2x128xf32>
      %cst_175 = arith.constant dense<0.000000e+00> : vector<2xf32>
      %601 = vector.multi_reduction <add>, %600, %cst_175 [1] : vector<2x128xf32> to vector<2xf32>
      %602 = vector.shape_cast %601 : vector<2xf32> to vector<2x1xf32>
      %cst_176 = arith.constant -2.77258873 : f32
      %603 = vector.broadcast %cst_176 : f32 to vector<2x1xf32>
      %604 = arith.subf %603, %597 : vector<2x1xf32>
      %605 = math.log %602 : vector<2x1xf32>
      %606 = arith.subf %604, %605 : vector<2x1xf32>
      %607 = arith.subf %594, %19 : vector<2x128xf32>
      %cst_177 = arith.constant dense<0xFF800000> : vector<2xf32>
      %608 = vector.multi_reduction <maximumf>, %607, %cst_177 [1] : vector<2x128xf32> to vector<2xf32>
      %609 = vector.shape_cast %608 : vector<2xf32> to vector<2x1xf32>
      %610 = vector.broadcast %609 : vector<2x1xf32> to vector<2x128xf32>
      %611 = arith.subf %607, %610 : vector<2x128xf32>
      %612 = math.exp %611 : vector<2x128xf32>
      %cst_178 = arith.constant dense<0.000000e+00> : vector<2xf32>
      %613 = vector.multi_reduction <add>, %612, %cst_178 [1] : vector<2x128xf32> to vector<2xf32>
      %614 = vector.shape_cast %613 : vector<2xf32> to vector<2x1xf32>
      %cst_179 = arith.constant -2.77258873 : f32
      %615 = vector.broadcast %cst_179 : f32 to vector<2x1xf32>
      %616 = arith.subf %615, %609 : vector<2x1xf32>
      %617 = math.log %614 : vector<2x1xf32>
      %618 = arith.subf %616, %617 : vector<2x1xf32>
      %619 = arith.subf %594, %24 : vector<2x128xf32>
      %cst_180 = arith.constant dense<0xFF800000> : vector<2xf32>
      %620 = vector.multi_reduction <maximumf>, %619, %cst_180 [1] : vector<2x128xf32> to vector<2xf32>
      %621 = vector.shape_cast %620 : vector<2xf32> to vector<2x1xf32>
      %622 = vector.broadcast %621 : vector<2x1xf32> to vector<2x128xf32>
      %623 = arith.subf %619, %622 : vector<2x128xf32>
      %624 = math.exp %623 : vector<2x128xf32>
      %cst_181 = arith.constant dense<0.000000e+00> : vector<2xf32>
      %625 = vector.multi_reduction <add>, %624, %cst_181 [1] : vector<2x128xf32> to vector<2xf32>
      %626 = vector.shape_cast %625 : vector<2xf32> to vector<2x1xf32>
      %cst_182 = arith.constant -2.77258873 : f32
      %627 = vector.broadcast %cst_182 : f32 to vector<2x1xf32>
      %628 = arith.subf %627, %621 : vector<2x1xf32>
      %629 = math.log %626 : vector<2x1xf32>
      %630 = arith.subf %628, %629 : vector<2x1xf32>
      %631 = arith.subf %594, %29 : vector<2x128xf32>
      %cst_183 = arith.constant dense<0xFF800000> : vector<2xf32>
      %632 = vector.multi_reduction <maximumf>, %631, %cst_183 [1] : vector<2x128xf32> to vector<2xf32>
      %633 = vector.shape_cast %632 : vector<2xf32> to vector<2x1xf32>
      %634 = vector.broadcast %633 : vector<2x1xf32> to vector<2x128xf32>
      %635 = arith.subf %631, %634 : vector<2x128xf32>
      %636 = math.exp %635 : vector<2x128xf32>
      %cst_184 = arith.constant dense<0.000000e+00> : vector<2xf32>
      %637 = vector.multi_reduction <add>, %636, %cst_184 [1] : vector<2x128xf32> to vector<2xf32>
      %638 = vector.shape_cast %637 : vector<2xf32> to vector<2x1xf32>
      %cst_185 = arith.constant -0.207639366 : f32
      %639 = vector.broadcast %cst_185 : f32 to vector<2x1xf32>
      %640 = arith.subf %639, %633 : vector<2x1xf32>
      %641 = math.log %638 : vector<2x1xf32>
      %642 = arith.subf %640, %641 : vector<2x1xf32>
      %643 = vector.broadcast %606 : vector<2x1xf32> to vector<2x128xf32>
      %644 = arith.subf %643, %14 : vector<2x128xf32>
      %645 = vector.broadcast %618 : vector<2x1xf32> to vector<2x128xf32>
      %646 = arith.subf %645, %19 : vector<2x128xf32>
      %647 = vector.broadcast %630 : vector<2x1xf32> to vector<2x128xf32>
      %648 = arith.subf %647, %24 : vector<2x128xf32>
      %649 = vector.broadcast %642 : vector<2x1xf32> to vector<2x128xf32>
      %650 = arith.subf %649, %29 : vector<2x128xf32>
      %651 = arith.maximumf %644, %646 : vector<2x128xf32>
      %652 = arith.maximumf %651, %648 : vector<2x128xf32>
      %653 = arith.maximumf %652, %650 : vector<2x128xf32>
      %654 = arith.subf %644, %653 : vector<2x128xf32>
      %655 = math.exp %654 : vector<2x128xf32>
      %656 = arith.subf %646, %653 : vector<2x128xf32>
      %657 = math.exp %656 : vector<2x128xf32>
      %658 = arith.addf %655, %657 : vector<2x128xf32>
      %659 = arith.subf %648, %653 : vector<2x128xf32>
      %660 = math.exp %659 : vector<2x128xf32>
      %661 = arith.addf %658, %660 : vector<2x128xf32>
      %662 = arith.subf %650, %653 : vector<2x128xf32>
      %663 = math.exp %662 : vector<2x128xf32>
      %664 = arith.addf %661, %663 : vector<2x128xf32>
      %cst_186 = arith.constant -2.77258873 : f32
      %665 = vector.broadcast %cst_186 : f32 to vector<2x128xf32>
      %666 = arith.subf %665, %653 : vector<2x128xf32>
      %667 = math.log %664 : vector<2x128xf32>
      %668 = arith.subf %666, %667 : vector<2x128xf32>
      %669 = vector.broadcast %9 : vector<1x128xf32> to vector<2x128xf32>
      %670 = arith.addf %668, %669 : vector<2x128xf32>
      %671 = arith.subf %670, %14 : vector<2x128xf32>
      %cst_187 = arith.constant dense<0xFF800000> : vector<2xf32>
      %672 = vector.multi_reduction <maximumf>, %671, %cst_187 [1] : vector<2x128xf32> to vector<2xf32>
      %673 = vector.shape_cast %672 : vector<2xf32> to vector<2x1xf32>
      %674 = vector.broadcast %673 : vector<2x1xf32> to vector<2x128xf32>
      %675 = arith.subf %671, %674 : vector<2x128xf32>
      %676 = math.exp %675 : vector<2x128xf32>
      %cst_188 = arith.constant dense<0.000000e+00> : vector<2xf32>
      %677 = vector.multi_reduction <add>, %676, %cst_188 [1] : vector<2x128xf32> to vector<2xf32>
      %678 = vector.shape_cast %677 : vector<2xf32> to vector<2x1xf32>
      %cst_189 = arith.constant -2.77258873 : f32
      %679 = vector.broadcast %cst_189 : f32 to vector<2x1xf32>
      %680 = arith.subf %679, %673 : vector<2x1xf32>
      %681 = math.log %678 : vector<2x1xf32>
      %682 = arith.subf %680, %681 : vector<2x1xf32>
      %683 = arith.subf %670, %19 : vector<2x128xf32>
      %cst_190 = arith.constant dense<0xFF800000> : vector<2xf32>
      %684 = vector.multi_reduction <maximumf>, %683, %cst_190 [1] : vector<2x128xf32> to vector<2xf32>
      %685 = vector.shape_cast %684 : vector<2xf32> to vector<2x1xf32>
      %686 = vector.broadcast %685 : vector<2x1xf32> to vector<2x128xf32>
      %687 = arith.subf %683, %686 : vector<2x128xf32>
      %688 = math.exp %687 : vector<2x128xf32>
      %cst_191 = arith.constant dense<0.000000e+00> : vector<2xf32>
      %689 = vector.multi_reduction <add>, %688, %cst_191 [1] : vector<2x128xf32> to vector<2xf32>
      %690 = vector.shape_cast %689 : vector<2xf32> to vector<2x1xf32>
      %cst_192 = arith.constant -2.77258873 : f32
      %691 = vector.broadcast %cst_192 : f32 to vector<2x1xf32>
      %692 = arith.subf %691, %685 : vector<2x1xf32>
      %693 = math.log %690 : vector<2x1xf32>
      %694 = arith.subf %692, %693 : vector<2x1xf32>
      %695 = arith.subf %670, %24 : vector<2x128xf32>
      %cst_193 = arith.constant dense<0xFF800000> : vector<2xf32>
      %696 = vector.multi_reduction <maximumf>, %695, %cst_193 [1] : vector<2x128xf32> to vector<2xf32>
      %697 = vector.shape_cast %696 : vector<2xf32> to vector<2x1xf32>
      %698 = vector.broadcast %697 : vector<2x1xf32> to vector<2x128xf32>
      %699 = arith.subf %695, %698 : vector<2x128xf32>
      %700 = math.exp %699 : vector<2x128xf32>
      %cst_194 = arith.constant dense<0.000000e+00> : vector<2xf32>
      %701 = vector.multi_reduction <add>, %700, %cst_194 [1] : vector<2x128xf32> to vector<2xf32>
      %702 = vector.shape_cast %701 : vector<2xf32> to vector<2x1xf32>
      %cst_195 = arith.constant -2.77258873 : f32
      %703 = vector.broadcast %cst_195 : f32 to vector<2x1xf32>
      %704 = arith.subf %703, %697 : vector<2x1xf32>
      %705 = math.log %702 : vector<2x1xf32>
      %706 = arith.subf %704, %705 : vector<2x1xf32>
      %707 = arith.subf %670, %29 : vector<2x128xf32>
      %cst_196 = arith.constant dense<0xFF800000> : vector<2xf32>
      %708 = vector.multi_reduction <maximumf>, %707, %cst_196 [1] : vector<2x128xf32> to vector<2xf32>
      %709 = vector.shape_cast %708 : vector<2xf32> to vector<2x1xf32>
      %710 = vector.broadcast %709 : vector<2x1xf32> to vector<2x128xf32>
      %711 = arith.subf %707, %710 : vector<2x128xf32>
      %712 = math.exp %711 : vector<2x128xf32>
      %cst_197 = arith.constant dense<0.000000e+00> : vector<2xf32>
      %713 = vector.multi_reduction <add>, %712, %cst_197 [1] : vector<2x128xf32> to vector<2xf32>
      %714 = vector.shape_cast %713 : vector<2xf32> to vector<2x1xf32>
      %cst_198 = arith.constant -0.207639366 : f32
      %715 = vector.broadcast %cst_198 : f32 to vector<2x1xf32>
      %716 = arith.subf %715, %709 : vector<2x1xf32>
      %717 = math.log %714 : vector<2x1xf32>
      %718 = arith.subf %716, %717 : vector<2x1xf32>
      %719 = vector.broadcast %682 : vector<2x1xf32> to vector<2x128xf32>
      %720 = arith.subf %719, %14 : vector<2x128xf32>
      %721 = vector.broadcast %694 : vector<2x1xf32> to vector<2x128xf32>
      %722 = arith.subf %721, %19 : vector<2x128xf32>
      %723 = vector.broadcast %706 : vector<2x1xf32> to vector<2x128xf32>
      %724 = arith.subf %723, %24 : vector<2x128xf32>
      %725 = vector.broadcast %718 : vector<2x1xf32> to vector<2x128xf32>
      %726 = arith.subf %725, %29 : vector<2x128xf32>
      %727 = arith.maximumf %720, %722 : vector<2x128xf32>
      %728 = arith.maximumf %727, %724 : vector<2x128xf32>
      %729 = arith.maximumf %728, %726 : vector<2x128xf32>
      %730 = arith.subf %720, %729 : vector<2x128xf32>
      %731 = math.exp %730 : vector<2x128xf32>
      %732 = arith.subf %722, %729 : vector<2x128xf32>
      %733 = math.exp %732 : vector<2x128xf32>
      %734 = arith.addf %731, %733 : vector<2x128xf32>
      %735 = arith.subf %724, %729 : vector<2x128xf32>
      %736 = math.exp %735 : vector<2x128xf32>
      %737 = arith.addf %734, %736 : vector<2x128xf32>
      %738 = arith.subf %726, %729 : vector<2x128xf32>
      %739 = math.exp %738 : vector<2x128xf32>
      %740 = arith.addf %737, %739 : vector<2x128xf32>
      %cst_199 = arith.constant -2.77258873 : f32
      %741 = vector.broadcast %cst_199 : f32 to vector<2x128xf32>
      %742 = arith.subf %741, %729 : vector<2x128xf32>
      %743 = math.log %740 : vector<2x128xf32>
      %744 = arith.subf %742, %743 : vector<2x128xf32>
      %745 = vector.broadcast %9 : vector<1x128xf32> to vector<2x128xf32>
      %746 = arith.addf %744, %745 : vector<2x128xf32>
      %747 = arith.subf %746, %14 : vector<2x128xf32>
      %cst_200 = arith.constant dense<0xFF800000> : vector<2xf32>
      %748 = vector.multi_reduction <maximumf>, %747, %cst_200 [1] : vector<2x128xf32> to vector<2xf32>
      %749 = vector.shape_cast %748 : vector<2xf32> to vector<2x1xf32>
      %750 = vector.broadcast %749 : vector<2x1xf32> to vector<2x128xf32>
      %751 = arith.subf %747, %750 : vector<2x128xf32>
      %752 = math.exp %751 : vector<2x128xf32>
      %cst_201 = arith.constant dense<0.000000e+00> : vector<2xf32>
      %753 = vector.multi_reduction <add>, %752, %cst_201 [1] : vector<2x128xf32> to vector<2xf32>
      %754 = vector.shape_cast %753 : vector<2xf32> to vector<2x1xf32>
      %cst_202 = arith.constant -2.77258873 : f32
      %755 = vector.broadcast %cst_202 : f32 to vector<2x1xf32>
      %756 = arith.subf %755, %749 : vector<2x1xf32>
      %757 = math.log %754 : vector<2x1xf32>
      %758 = arith.subf %756, %757 : vector<2x1xf32>
      %759 = arith.subf %746, %19 : vector<2x128xf32>
      %cst_203 = arith.constant dense<0xFF800000> : vector<2xf32>
      %760 = vector.multi_reduction <maximumf>, %759, %cst_203 [1] : vector<2x128xf32> to vector<2xf32>
      %761 = vector.shape_cast %760 : vector<2xf32> to vector<2x1xf32>
      %762 = vector.broadcast %761 : vector<2x1xf32> to vector<2x128xf32>
      %763 = arith.subf %759, %762 : vector<2x128xf32>
      %764 = math.exp %763 : vector<2x128xf32>
      %cst_204 = arith.constant dense<0.000000e+00> : vector<2xf32>
      %765 = vector.multi_reduction <add>, %764, %cst_204 [1] : vector<2x128xf32> to vector<2xf32>
      %766 = vector.shape_cast %765 : vector<2xf32> to vector<2x1xf32>
      %cst_205 = arith.constant -2.77258873 : f32
      %767 = vector.broadcast %cst_205 : f32 to vector<2x1xf32>
      %768 = arith.subf %767, %761 : vector<2x1xf32>
      %769 = math.log %766 : vector<2x1xf32>
      %770 = arith.subf %768, %769 : vector<2x1xf32>
      %771 = arith.subf %746, %24 : vector<2x128xf32>
      %cst_206 = arith.constant dense<0xFF800000> : vector<2xf32>
      %772 = vector.multi_reduction <maximumf>, %771, %cst_206 [1] : vector<2x128xf32> to vector<2xf32>
      %773 = vector.shape_cast %772 : vector<2xf32> to vector<2x1xf32>
      %774 = vector.broadcast %773 : vector<2x1xf32> to vector<2x128xf32>
      %775 = arith.subf %771, %774 : vector<2x128xf32>
      %776 = math.exp %775 : vector<2x128xf32>
      %cst_207 = arith.constant dense<0.000000e+00> : vector<2xf32>
      %777 = vector.multi_reduction <add>, %776, %cst_207 [1] : vector<2x128xf32> to vector<2xf32>
      %778 = vector.shape_cast %777 : vector<2xf32> to vector<2x1xf32>
      %cst_208 = arith.constant -2.77258873 : f32
      %779 = vector.broadcast %cst_208 : f32 to vector<2x1xf32>
      %780 = arith.subf %779, %773 : vector<2x1xf32>
      %781 = math.log %778 : vector<2x1xf32>
      %782 = arith.subf %780, %781 : vector<2x1xf32>
      %783 = arith.subf %746, %29 : vector<2x128xf32>
      %cst_209 = arith.constant dense<0xFF800000> : vector<2xf32>
      %784 = vector.multi_reduction <maximumf>, %783, %cst_209 [1] : vector<2x128xf32> to vector<2xf32>
      %785 = vector.shape_cast %784 : vector<2xf32> to vector<2x1xf32>
      %786 = vector.broadcast %785 : vector<2x1xf32> to vector<2x128xf32>
      %787 = arith.subf %783, %786 : vector<2x128xf32>
      %788 = math.exp %787 : vector<2x128xf32>
      %cst_210 = arith.constant dense<0.000000e+00> : vector<2xf32>
      %789 = vector.multi_reduction <add>, %788, %cst_210 [1] : vector<2x128xf32> to vector<2xf32>
      %790 = vector.shape_cast %789 : vector<2xf32> to vector<2x1xf32>
      %cst_211 = arith.constant -0.207639366 : f32
      %791 = vector.broadcast %cst_211 : f32 to vector<2x1xf32>
      %792 = arith.subf %791, %785 : vector<2x1xf32>
      %793 = math.log %790 : vector<2x1xf32>
      %794 = arith.subf %792, %793 : vector<2x1xf32>
      %795 = vector.broadcast %758 : vector<2x1xf32> to vector<2x128xf32>
      %796 = arith.subf %795, %14 : vector<2x128xf32>
      %797 = vector.broadcast %770 : vector<2x1xf32> to vector<2x128xf32>
      %798 = arith.subf %797, %19 : vector<2x128xf32>
      %799 = vector.broadcast %782 : vector<2x1xf32> to vector<2x128xf32>
      %800 = arith.subf %799, %24 : vector<2x128xf32>
      %801 = vector.broadcast %794 : vector<2x1xf32> to vector<2x128xf32>
      %802 = arith.subf %801, %29 : vector<2x128xf32>
      %803 = arith.maximumf %796, %798 : vector<2x128xf32>
      %804 = arith.maximumf %803, %800 : vector<2x128xf32>
      %805 = arith.maximumf %804, %802 : vector<2x128xf32>
      %806 = arith.subf %796, %805 : vector<2x128xf32>
      %807 = math.exp %806 : vector<2x128xf32>
      %808 = arith.subf %798, %805 : vector<2x128xf32>
      %809 = math.exp %808 : vector<2x128xf32>
      %810 = arith.addf %807, %809 : vector<2x128xf32>
      %811 = arith.subf %800, %805 : vector<2x128xf32>
      %812 = math.exp %811 : vector<2x128xf32>
      %813 = arith.addf %810, %812 : vector<2x128xf32>
      %814 = arith.subf %802, %805 : vector<2x128xf32>
      %815 = math.exp %814 : vector<2x128xf32>
      %816 = arith.addf %813, %815 : vector<2x128xf32>
      %cst_212 = arith.constant -2.77258873 : f32
      %817 = vector.broadcast %cst_212 : f32 to vector<2x128xf32>
      %818 = arith.subf %817, %805 : vector<2x128xf32>
      %819 = math.log %816 : vector<2x128xf32>
      %820 = arith.subf %818, %819 : vector<2x128xf32>
      %821 = vector.broadcast %9 : vector<1x128xf32> to vector<2x128xf32>
      %822 = arith.addf %820, %821 : vector<2x128xf32>
      %823 = arith.subf %822, %14 : vector<2x128xf32>
      %cst_213 = arith.constant dense<0xFF800000> : vector<2xf32>
      %824 = vector.multi_reduction <maximumf>, %823, %cst_213 [1] : vector<2x128xf32> to vector<2xf32>
      %825 = vector.shape_cast %824 : vector<2xf32> to vector<2x1xf32>
      %826 = vector.broadcast %825 : vector<2x1xf32> to vector<2x128xf32>
      %827 = arith.subf %823, %826 : vector<2x128xf32>
      %828 = math.exp %827 : vector<2x128xf32>
      %cst_214 = arith.constant dense<0.000000e+00> : vector<2xf32>
      %829 = vector.multi_reduction <add>, %828, %cst_214 [1] : vector<2x128xf32> to vector<2xf32>
      %830 = vector.shape_cast %829 : vector<2xf32> to vector<2x1xf32>
      %cst_215 = arith.constant -2.77258873 : f32
      %831 = vector.broadcast %cst_215 : f32 to vector<2x1xf32>
      %832 = arith.subf %831, %825 : vector<2x1xf32>
      %833 = math.log %830 : vector<2x1xf32>
      %834 = arith.subf %832, %833 : vector<2x1xf32>
      %835 = arith.subf %822, %19 : vector<2x128xf32>
      %cst_216 = arith.constant dense<0xFF800000> : vector<2xf32>
      %836 = vector.multi_reduction <maximumf>, %835, %cst_216 [1] : vector<2x128xf32> to vector<2xf32>
      %837 = vector.shape_cast %836 : vector<2xf32> to vector<2x1xf32>
      %838 = vector.broadcast %837 : vector<2x1xf32> to vector<2x128xf32>
      %839 = arith.subf %835, %838 : vector<2x128xf32>
      %840 = math.exp %839 : vector<2x128xf32>
      %cst_217 = arith.constant dense<0.000000e+00> : vector<2xf32>
      %841 = vector.multi_reduction <add>, %840, %cst_217 [1] : vector<2x128xf32> to vector<2xf32>
      %842 = vector.shape_cast %841 : vector<2xf32> to vector<2x1xf32>
      %cst_218 = arith.constant -2.77258873 : f32
      %843 = vector.broadcast %cst_218 : f32 to vector<2x1xf32>
      %844 = arith.subf %843, %837 : vector<2x1xf32>
      %845 = math.log %842 : vector<2x1xf32>
      %846 = arith.subf %844, %845 : vector<2x1xf32>
      %847 = arith.subf %822, %24 : vector<2x128xf32>
      %cst_219 = arith.constant dense<0xFF800000> : vector<2xf32>
      %848 = vector.multi_reduction <maximumf>, %847, %cst_219 [1] : vector<2x128xf32> to vector<2xf32>
      %849 = vector.shape_cast %848 : vector<2xf32> to vector<2x1xf32>
      %850 = vector.broadcast %849 : vector<2x1xf32> to vector<2x128xf32>
      %851 = arith.subf %847, %850 : vector<2x128xf32>
      %852 = math.exp %851 : vector<2x128xf32>
      %cst_220 = arith.constant dense<0.000000e+00> : vector<2xf32>
      %853 = vector.multi_reduction <add>, %852, %cst_220 [1] : vector<2x128xf32> to vector<2xf32>
      %854 = vector.shape_cast %853 : vector<2xf32> to vector<2x1xf32>
      %cst_221 = arith.constant -2.77258873 : f32
      %855 = vector.broadcast %cst_221 : f32 to vector<2x1xf32>
      %856 = arith.subf %855, %849 : vector<2x1xf32>
      %857 = math.log %854 : vector<2x1xf32>
      %858 = arith.subf %856, %857 : vector<2x1xf32>
      %859 = arith.subf %822, %29 : vector<2x128xf32>
      %cst_222 = arith.constant dense<0xFF800000> : vector<2xf32>
      %860 = vector.multi_reduction <maximumf>, %859, %cst_222 [1] : vector<2x128xf32> to vector<2xf32>
      %861 = vector.shape_cast %860 : vector<2xf32> to vector<2x1xf32>
      %862 = vector.broadcast %861 : vector<2x1xf32> to vector<2x128xf32>
      %863 = arith.subf %859, %862 : vector<2x128xf32>
      %864 = math.exp %863 : vector<2x128xf32>
      %cst_223 = arith.constant dense<0.000000e+00> : vector<2xf32>
      %865 = vector.multi_reduction <add>, %864, %cst_223 [1] : vector<2x128xf32> to vector<2xf32>
      %866 = vector.shape_cast %865 : vector<2xf32> to vector<2x1xf32>
      %cst_224 = arith.constant -0.207639366 : f32
      %867 = vector.broadcast %cst_224 : f32 to vector<2x1xf32>
      %868 = arith.subf %867, %861 : vector<2x1xf32>
      %869 = math.log %866 : vector<2x1xf32>
      %870 = arith.subf %868, %869 : vector<2x1xf32>
      %871 = vector.broadcast %834 : vector<2x1xf32> to vector<2x128xf32>
      %872 = arith.subf %871, %14 : vector<2x128xf32>
      %873 = vector.broadcast %846 : vector<2x1xf32> to vector<2x128xf32>
      %874 = arith.subf %873, %19 : vector<2x128xf32>
      %875 = vector.broadcast %858 : vector<2x1xf32> to vector<2x128xf32>
      %876 = arith.subf %875, %24 : vector<2x128xf32>
      %877 = vector.broadcast %870 : vector<2x1xf32> to vector<2x128xf32>
      %878 = arith.subf %877, %29 : vector<2x128xf32>
      %879 = arith.maximumf %872, %874 : vector<2x128xf32>
      %880 = arith.maximumf %879, %876 : vector<2x128xf32>
      %881 = arith.maximumf %880, %878 : vector<2x128xf32>
      %882 = arith.subf %872, %881 : vector<2x128xf32>
      %883 = math.exp %882 : vector<2x128xf32>
      %884 = arith.subf %874, %881 : vector<2x128xf32>
      %885 = math.exp %884 : vector<2x128xf32>
      %886 = arith.addf %883, %885 : vector<2x128xf32>
      %887 = arith.subf %876, %881 : vector<2x128xf32>
      %888 = math.exp %887 : vector<2x128xf32>
      %889 = arith.addf %886, %888 : vector<2x128xf32>
      %890 = arith.subf %878, %881 : vector<2x128xf32>
      %891 = math.exp %890 : vector<2x128xf32>
      %892 = arith.addf %889, %891 : vector<2x128xf32>
      %cst_225 = arith.constant -2.77258873 : f32
      %893 = vector.broadcast %cst_225 : f32 to vector<2x128xf32>
      %894 = arith.subf %893, %881 : vector<2x128xf32>
      %895 = math.log %892 : vector<2x128xf32>
      %896 = arith.subf %894, %895 : vector<2x128xf32>
      %897 = vector.broadcast %9 : vector<1x128xf32> to vector<2x128xf32>
      %898 = arith.addf %896, %897 : vector<2x128xf32>
      %899 = arith.subf %898, %14 : vector<2x128xf32>
      %cst_226 = arith.constant dense<0xFF800000> : vector<2xf32>
      %900 = vector.multi_reduction <maximumf>, %899, %cst_226 [1] : vector<2x128xf32> to vector<2xf32>
      %901 = vector.shape_cast %900 : vector<2xf32> to vector<2x1xf32>
      %902 = vector.broadcast %901 : vector<2x1xf32> to vector<2x128xf32>
      %903 = arith.subf %899, %902 : vector<2x128xf32>
      %904 = math.exp %903 : vector<2x128xf32>
      %cst_227 = arith.constant dense<0.000000e+00> : vector<2xf32>
      %905 = vector.multi_reduction <add>, %904, %cst_227 [1] : vector<2x128xf32> to vector<2xf32>
      %906 = vector.shape_cast %905 : vector<2xf32> to vector<2x1xf32>
      %cst_228 = arith.constant -2.77258873 : f32
      %907 = vector.broadcast %cst_228 : f32 to vector<2x1xf32>
      %908 = arith.subf %907, %901 : vector<2x1xf32>
      %909 = math.log %906 : vector<2x1xf32>
      %910 = arith.subf %908, %909 : vector<2x1xf32>
      %911 = arith.subf %898, %19 : vector<2x128xf32>
      %cst_229 = arith.constant dense<0xFF800000> : vector<2xf32>
      %912 = vector.multi_reduction <maximumf>, %911, %cst_229 [1] : vector<2x128xf32> to vector<2xf32>
      %913 = vector.shape_cast %912 : vector<2xf32> to vector<2x1xf32>
      %914 = vector.broadcast %913 : vector<2x1xf32> to vector<2x128xf32>
      %915 = arith.subf %911, %914 : vector<2x128xf32>
      %916 = math.exp %915 : vector<2x128xf32>
      %cst_230 = arith.constant dense<0.000000e+00> : vector<2xf32>
      %917 = vector.multi_reduction <add>, %916, %cst_230 [1] : vector<2x128xf32> to vector<2xf32>
      %918 = vector.shape_cast %917 : vector<2xf32> to vector<2x1xf32>
      %cst_231 = arith.constant -2.77258873 : f32
      %919 = vector.broadcast %cst_231 : f32 to vector<2x1xf32>
      %920 = arith.subf %919, %913 : vector<2x1xf32>
      %921 = math.log %918 : vector<2x1xf32>
      %922 = arith.subf %920, %921 : vector<2x1xf32>
      %923 = arith.subf %898, %24 : vector<2x128xf32>
      %cst_232 = arith.constant dense<0xFF800000> : vector<2xf32>
      %924 = vector.multi_reduction <maximumf>, %923, %cst_232 [1] : vector<2x128xf32> to vector<2xf32>
      %925 = vector.shape_cast %924 : vector<2xf32> to vector<2x1xf32>
      %926 = vector.broadcast %925 : vector<2x1xf32> to vector<2x128xf32>
      %927 = arith.subf %923, %926 : vector<2x128xf32>
      %928 = math.exp %927 : vector<2x128xf32>
      %cst_233 = arith.constant dense<0.000000e+00> : vector<2xf32>
      %929 = vector.multi_reduction <add>, %928, %cst_233 [1] : vector<2x128xf32> to vector<2xf32>
      %930 = vector.shape_cast %929 : vector<2xf32> to vector<2x1xf32>
      %cst_234 = arith.constant -2.77258873 : f32
      %931 = vector.broadcast %cst_234 : f32 to vector<2x1xf32>
      %932 = arith.subf %931, %925 : vector<2x1xf32>
      %933 = math.log %930 : vector<2x1xf32>
      %934 = arith.subf %932, %933 : vector<2x1xf32>
      %935 = arith.subf %898, %29 : vector<2x128xf32>
      %cst_235 = arith.constant dense<0xFF800000> : vector<2xf32>
      %936 = vector.multi_reduction <maximumf>, %935, %cst_235 [1] : vector<2x128xf32> to vector<2xf32>
      %937 = vector.shape_cast %936 : vector<2xf32> to vector<2x1xf32>
      %938 = vector.broadcast %937 : vector<2x1xf32> to vector<2x128xf32>
      %939 = arith.subf %935, %938 : vector<2x128xf32>
      %940 = math.exp %939 : vector<2x128xf32>
      %cst_236 = arith.constant dense<0.000000e+00> : vector<2xf32>
      %941 = vector.multi_reduction <add>, %940, %cst_236 [1] : vector<2x128xf32> to vector<2xf32>
      %942 = vector.shape_cast %941 : vector<2xf32> to vector<2x1xf32>
      %cst_237 = arith.constant -0.207639366 : f32
      %943 = vector.broadcast %cst_237 : f32 to vector<2x1xf32>
      %944 = arith.subf %943, %937 : vector<2x1xf32>
      %945 = math.log %942 : vector<2x1xf32>
      %946 = arith.subf %944, %945 : vector<2x1xf32>
      %947 = vector.broadcast %910 : vector<2x1xf32> to vector<2x128xf32>
      %948 = arith.subf %947, %14 : vector<2x128xf32>
      %949 = vector.broadcast %922 : vector<2x1xf32> to vector<2x128xf32>
      %950 = arith.subf %949, %19 : vector<2x128xf32>
      %951 = vector.broadcast %934 : vector<2x1xf32> to vector<2x128xf32>
      %952 = arith.subf %951, %24 : vector<2x128xf32>
      %953 = vector.broadcast %946 : vector<2x1xf32> to vector<2x128xf32>
      %954 = arith.subf %953, %29 : vector<2x128xf32>
      %955 = arith.maximumf %948, %950 : vector<2x128xf32>
      %956 = arith.maximumf %955, %952 : vector<2x128xf32>
      %957 = arith.maximumf %956, %954 : vector<2x128xf32>
      %958 = arith.subf %948, %957 : vector<2x128xf32>
      %959 = math.exp %958 : vector<2x128xf32>
      %960 = arith.subf %950, %957 : vector<2x128xf32>
      %961 = math.exp %960 : vector<2x128xf32>
      %962 = arith.addf %959, %961 : vector<2x128xf32>
      %963 = arith.subf %952, %957 : vector<2x128xf32>
      %964 = math.exp %963 : vector<2x128xf32>
      %965 = arith.addf %962, %964 : vector<2x128xf32>
      %966 = arith.subf %954, %957 : vector<2x128xf32>
      %967 = math.exp %966 : vector<2x128xf32>
      %968 = arith.addf %965, %967 : vector<2x128xf32>
      %cst_238 = arith.constant -2.77258873 : f32
      %969 = vector.broadcast %cst_238 : f32 to vector<2x128xf32>
      %970 = arith.subf %969, %957 : vector<2x128xf32>
      %971 = math.log %968 : vector<2x128xf32>
      %972 = arith.subf %970, %971 : vector<2x128xf32>
      %973 = vector.broadcast %9 : vector<1x128xf32> to vector<2x128xf32>
      %974 = arith.addf %972, %973 : vector<2x128xf32>
      %975 = arith.subf %974, %14 : vector<2x128xf32>
      %cst_239 = arith.constant dense<0xFF800000> : vector<2xf32>
      %976 = vector.multi_reduction <maximumf>, %975, %cst_239 [1] : vector<2x128xf32> to vector<2xf32>
      %977 = vector.shape_cast %976 : vector<2xf32> to vector<2x1xf32>
      %978 = vector.broadcast %977 : vector<2x1xf32> to vector<2x128xf32>
      %979 = arith.subf %975, %978 : vector<2x128xf32>
      %980 = math.exp %979 : vector<2x128xf32>
      %cst_240 = arith.constant dense<0.000000e+00> : vector<2xf32>
      %981 = vector.multi_reduction <add>, %980, %cst_240 [1] : vector<2x128xf32> to vector<2xf32>
      %982 = vector.shape_cast %981 : vector<2xf32> to vector<2x1xf32>
      %cst_241 = arith.constant -2.77258873 : f32
      %983 = vector.broadcast %cst_241 : f32 to vector<2x1xf32>
      %984 = arith.subf %983, %977 : vector<2x1xf32>
      %985 = math.log %982 : vector<2x1xf32>
      %986 = arith.subf %984, %985 : vector<2x1xf32>
      %987 = arith.subf %974, %19 : vector<2x128xf32>
      %cst_242 = arith.constant dense<0xFF800000> : vector<2xf32>
      %988 = vector.multi_reduction <maximumf>, %987, %cst_242 [1] : vector<2x128xf32> to vector<2xf32>
      %989 = vector.shape_cast %988 : vector<2xf32> to vector<2x1xf32>
      %990 = vector.broadcast %989 : vector<2x1xf32> to vector<2x128xf32>
      %991 = arith.subf %987, %990 : vector<2x128xf32>
      %992 = math.exp %991 : vector<2x128xf32>
      %cst_243 = arith.constant dense<0.000000e+00> : vector<2xf32>
      %993 = vector.multi_reduction <add>, %992, %cst_243 [1] : vector<2x128xf32> to vector<2xf32>
      %994 = vector.shape_cast %993 : vector<2xf32> to vector<2x1xf32>
      %cst_244 = arith.constant -2.77258873 : f32
      %995 = vector.broadcast %cst_244 : f32 to vector<2x1xf32>
      %996 = arith.subf %995, %989 : vector<2x1xf32>
      %997 = math.log %994 : vector<2x1xf32>
      %998 = arith.subf %996, %997 : vector<2x1xf32>
      %999 = arith.subf %974, %24 : vector<2x128xf32>
      %cst_245 = arith.constant dense<0xFF800000> : vector<2xf32>
      %1000 = vector.multi_reduction <maximumf>, %999, %cst_245 [1] : vector<2x128xf32> to vector<2xf32>
      %1001 = vector.shape_cast %1000 : vector<2xf32> to vector<2x1xf32>
      %1002 = vector.broadcast %1001 : vector<2x1xf32> to vector<2x128xf32>
      %1003 = arith.subf %999, %1002 : vector<2x128xf32>
      %1004 = math.exp %1003 : vector<2x128xf32>
      %cst_246 = arith.constant dense<0.000000e+00> : vector<2xf32>
      %1005 = vector.multi_reduction <add>, %1004, %cst_246 [1] : vector<2x128xf32> to vector<2xf32>
      %1006 = vector.shape_cast %1005 : vector<2xf32> to vector<2x1xf32>
      %cst_247 = arith.constant -2.77258873 : f32
      %1007 = vector.broadcast %cst_247 : f32 to vector<2x1xf32>
      %1008 = arith.subf %1007, %1001 : vector<2x1xf32>
      %1009 = math.log %1006 : vector<2x1xf32>
      %1010 = arith.subf %1008, %1009 : vector<2x1xf32>
      %1011 = arith.subf %974, %29 : vector<2x128xf32>
      %cst_248 = arith.constant dense<0xFF800000> : vector<2xf32>
      %1012 = vector.multi_reduction <maximumf>, %1011, %cst_248 [1] : vector<2x128xf32> to vector<2xf32>
      %1013 = vector.shape_cast %1012 : vector<2xf32> to vector<2x1xf32>
      %1014 = vector.broadcast %1013 : vector<2x1xf32> to vector<2x128xf32>
      %1015 = arith.subf %1011, %1014 : vector<2x128xf32>
      %1016 = math.exp %1015 : vector<2x128xf32>
      %cst_249 = arith.constant dense<0.000000e+00> : vector<2xf32>
      %1017 = vector.multi_reduction <add>, %1016, %cst_249 [1] : vector<2x128xf32> to vector<2xf32>
      %1018 = vector.shape_cast %1017 : vector<2xf32> to vector<2x1xf32>
      %cst_250 = arith.constant -0.207639366 : f32
      %1019 = vector.broadcast %cst_250 : f32 to vector<2x1xf32>
      %1020 = arith.subf %1019, %1013 : vector<2x1xf32>
      %1021 = math.log %1018 : vector<2x1xf32>
      %1022 = arith.subf %1020, %1021 : vector<2x1xf32>
      scf.yield %974, %986, %998, %1010, %1022 : vector<2x128xf32>, vector<2x1xf32>, vector<2x1xf32>, vector<2x1xf32>, vector<2x1xf32>
    }
    %279 = vector.broadcast %278#1 : vector<2x1xf32> to vector<2x128xf32>
    %280 = arith.addf %278#0, %279 : vector<2x128xf32>
    %281 = arith.subf %280, %14 : vector<2x128xf32>
    %282 = math.exp %281 : vector<2x128xf32>
    %283 = vector.broadcast %278#2 : vector<2x1xf32> to vector<2x128xf32>
    %284 = arith.addf %278#0, %283 : vector<2x128xf32>
    %285 = arith.subf %284, %19 : vector<2x128xf32>
    %286 = math.exp %285 : vector<2x128xf32>
    %287 = vector.broadcast %278#3 : vector<2x1xf32> to vector<2x128xf32>
    %288 = arith.addf %278#0, %287 : vector<2x128xf32>
    %289 = arith.subf %288, %24 : vector<2x128xf32>
    %290 = math.exp %289 : vector<2x128xf32>
    %291 = vector.broadcast %278#4 : vector<2x1xf32> to vector<2x128xf32>
    %292 = arith.addf %278#0, %291 : vector<2x128xf32>
    %293 = arith.subf %292, %29 : vector<2x128xf32>
    %294 = math.exp %293 : vector<2x128xf32>
    %cst_102 = arith.constant 1.600000e+01 : f32
    %295 = vector.broadcast %cst_102 : f32 to vector<2x128xf32>
    %296 = arith.mulf %282, %295 : vector<2x128xf32>
    %c0_103 = arith.constant 0 : index
    %c0_104 = arith.constant 0 : index
    %c0_105 = arith.constant 0 : index
    %297 = vector.load %arg6[%c0_103, %c0_104, %c0_105] : memref<3x2x128xf32, #tpu.memory_space<vmem>>, vector<1x2x128xf32>
    %298 = vector.shape_cast %297 : vector<1x2x128xf32> to vector<2x128xf32>
    %299 = vector.shape_cast %296 : vector<2x128xf32> to vector<1x2x128xf32>
    tpu.vector_store %arg6[%c0_103, %c0_104, %c0_105], %299 {strides = array<i32>} : memref<3x2x128xf32, #tpu.memory_space<vmem>>, vector<1x2x128xf32>,
    %cst_106 = arith.constant 1.600000e+01 : f32
    %300 = vector.broadcast %cst_106 : f32 to vector<2x128xf32>
    %301 = arith.mulf %286, %300 : vector<2x128xf32>
    %c1_107 = arith.constant 1 : index
    %c0_108 = arith.constant 0 : index
    %c0_109 = arith.constant 0 : index
    %302 = vector.load %arg6[%c1_107, %c0_108, %c0_109] : memref<3x2x128xf32, #tpu.memory_space<vmem>>, vector<1x2x128xf32>
    %303 = vector.shape_cast %302 : vector<1x2x128xf32> to vector<2x128xf32>
    %304 = vector.shape_cast %301 : vector<2x128xf32> to vector<1x2x128xf32>
    tpu.vector_store %arg6[%c1_107, %c0_108, %c0_109], %304 {strides = array<i32>} : memref<3x2x128xf32, #tpu.memory_space<vmem>>, vector<1x2x128xf32>,
    %cst_110 = arith.constant 1.600000e+01 : f32
    %305 = vector.broadcast %cst_110 : f32 to vector<2x128xf32>
    %306 = arith.mulf %290, %305 : vector<2x128xf32>
    %c2_111 = arith.constant 2 : index
    %c0_112 = arith.constant 0 : index
    %c0_113 = arith.constant 0 : index
    %307 = vector.load %arg6[%c2_111, %c0_112, %c0_113] : memref<3x2x128xf32, #tpu.memory_space<vmem>>, vector<1x2x128xf32>
    %308 = vector.shape_cast %307 : vector<1x2x128xf32> to vector<2x128xf32>
    %309 = vector.shape_cast %306 : vector<2x128xf32> to vector<1x2x128xf32>
    tpu.vector_store %arg6[%c2_111, %c0_112, %c0_113], %309 {strides = array<i32>} : memref<3x2x128xf32, #tpu.memory_space<vmem>>, vector<1x2x128xf32>,
    %c0_114 = arith.constant 0 : index
    %c0_115 = arith.constant 0 : index
    %310 = vector.load %arg3[%c0_114, %c0_115] : memref<2x3xf32, #tpu.memory_space<vmem>>, vector<2x1xf32>
    %311 = vector.broadcast %310 : vector<2x1xf32> to vector<2x128xf32>
    %312 = arith.subf %311, %1 : vector<2x128xf32>
    %313 = math.absf %312 : vector<2x128xf32>
    %cst_116 = arith.constant 0.000000e+00 : f32
    %314 = vector.broadcast %cst_116 : f32 to vector<2x128xf32>
    %315 = arith.subf %314, %313 : vector<2x128xf32>
    %cst_117 = arith.constant 1.000000e-01 : f32
    %316 = vector.broadcast %cst_117 : f32 to vector<2x128xf32>
    %317 = arith.divf %315, %316 : vector<2x128xf32>
    %318 = arith.negf %317 : vector<2x128xf32>
    %319 = math.exp %318 : vector<2x128xf32>
    %cst_118 = arith.constant 1.000000e+00 : f32
    %320 = vector.broadcast %cst_118 : f32 to vector<2x128xf32>
    %321 = arith.addf %320, %319 : vector<2x128xf32>
    %322 = arith.divf %320, %321 : vector<2x128xf32>
    %cst_119 = arith.constant 9.99999968E-21 : f32
    %323 = vector.broadcast %cst_119 : f32 to vector<2x128xf32>
    %324 = arith.addf %322, %323 : vector<2x128xf32>
    %325 = vector.broadcast %6 : vector<1x128xf32> to vector<2x128xf32>
    %326 = arith.mulf %324, %325 : vector<2x128xf32>
    %cst_120 = arith.constant dense<0.000000e+00> : vector<2xf32>
    %327 = vector.multi_reduction <add>, %326, %cst_120 [1] : vector<2x128xf32> to vector<2xf32>
    %328 = vector.shape_cast %327 : vector<2xf32> to vector<2x1xf32>
    %329 = vector.broadcast %328 : vector<2x1xf32> to vector<2x128xf32>
    %330 = arith.divf %324, %329 : vector<2x128xf32>
    %cst_121 = arith.constant 6.250000e-02 : f32
    %331 = vector.broadcast %cst_121 : f32 to vector<2x128xf32>
    %332 = arith.mulf %330, %331 : vector<2x128xf32>
    %c0_122 = arith.constant 0 : index
    %c1_123 = arith.constant 1 : index
    %333 = vector.load %arg3[%c0_122, %c1_123] : memref<2x3xf32, #tpu.memory_space<vmem>>, vector<2x1xf32>
    %334 = vector.broadcast %333 : vector<2x1xf32> to vector<2x128xf32>
    %335 = arith.subf %334, %1 : vector<2x128xf32>
    %336 = math.absf %335 : vector<2x128xf32>
    %cst_124 = arith.constant 0.000000e+00 : f32
    %337 = vector.broadcast %cst_124 : f32 to vector<2x128xf32>
    %338 = arith.subf %337, %336 : vector<2x128xf32>
    %cst_125 = arith.constant 1.000000e-01 : f32
    %339 = vector.broadcast %cst_125 : f32 to vector<2x128xf32>
    %340 = arith.divf %338, %339 : vector<2x128xf32>
    %341 = arith.negf %340 : vector<2x128xf32>
    %342 = math.exp %341 : vector<2x128xf32>
    %cst_126 = arith.constant 1.000000e+00 : f32
    %343 = vector.broadcast %cst_126 : f32 to vector<2x128xf32>
    %344 = arith.addf %343, %342 : vector<2x128xf32>
    %345 = arith.divf %343, %344 : vector<2x128xf32>
    %cst_127 = arith.constant 9.99999968E-21 : f32
    %346 = vector.broadcast %cst_127 : f32 to vector<2x128xf32>
    %347 = arith.addf %345, %346 : vector<2x128xf32>
    %348 = vector.broadcast %6 : vector<1x128xf32> to vector<2x128xf32>
    %349 = arith.mulf %347, %348 : vector<2x128xf32>
    %cst_128 = arith.constant dense<0.000000e+00> : vector<2xf32>
    %350 = vector.multi_reduction <add>, %349, %cst_128 [1] : vector<2x128xf32> to vector<2xf32>
    %351 = vector.shape_cast %350 : vector<2xf32> to vector<2x1xf32>
    %352 = vector.broadcast %351 : vector<2x1xf32> to vector<2x128xf32>
    %353 = arith.divf %347, %352 : vector<2x128xf32>
    %cst_129 = arith.constant 6.250000e-02 : f32
    %354 = vector.broadcast %cst_129 : f32 to vector<2x128xf32>
    %355 = arith.mulf %353, %354 : vector<2x128xf32>
    %356 = arith.addf %332, %355 : vector<2x128xf32>
    %c0_130 = arith.constant 0 : index
    %c2_131 = arith.constant 2 : index
    %357 = vector.load %arg3[%c0_130, %c2_131] : memref<2x3xf32, #tpu.memory_space<vmem>>, vector<2x1xf32>
    %358 = vector.broadcast %357 : vector<2x1xf32> to vector<2x128xf32>
    %359 = arith.subf %358, %1 : vector<2x128xf32>
    %360 = math.absf %359 : vector<2x128xf32>
    %cst_132 = arith.constant 0.000000e+00 : f32
    %361 = vector.broadcast %cst_132 : f32 to vector<2x128xf32>
    %362 = arith.subf %361, %360 : vector<2x128xf32>
    %cst_133 = arith.constant 1.000000e-01 : f32
    %363 = vector.broadcast %cst_133 : f32 to vector<2x128xf32>
    %364 = arith.divf %362, %363 : vector<2x128xf32>
    %365 = arith.negf %364 : vector<2x128xf32>
    %366 = math.exp %365 : vector<2x128xf32>
    %cst_134 = arith.constant 1.000000e+00 : f32
    %367 = vector.broadcast %cst_134 : f32 to vector<2x128xf32>
    %368 = arith.addf %367, %366 : vector<2x128xf32>
    %369 = arith.divf %367, %368 : vector<2x128xf32>
    %cst_135 = arith.constant 9.99999968E-21 : f32
    %370 = vector.broadcast %cst_135 : f32 to vector<2x128xf32>
    %371 = arith.addf %369, %370 : vector<2x128xf32>
    %372 = vector.broadcast %6 : vector<1x128xf32> to vector<2x128xf32>
    %373 = arith.mulf %371, %372 : vector<2x128xf32>
    %cst_136 = arith.constant dense<0.000000e+00> : vector<2xf32>
    %374 = vector.multi_reduction <add>, %373, %cst_136 [1] : vector<2x128xf32> to vector<2xf32>
    %375 = vector.shape_cast %374 : vector<2xf32> to vector<2x1xf32>
    %376 = vector.broadcast %375 : vector<2x1xf32> to vector<2x128xf32>
    %377 = arith.divf %371, %376 : vector<2x128xf32>
    %cst_137 = arith.constant 6.250000e-02 : f32
    %378 = vector.broadcast %cst_137 : f32 to vector<2x128xf32>
    %379 = arith.mulf %377, %378 : vector<2x128xf32>
    %380 = arith.addf %356, %379 : vector<2x128xf32>
    %cst_138 = arith.constant 6.250000e-02 : f32
    %381 = vector.broadcast %cst_138 : f32 to vector<2x128xf32>
    %382 = arith.subf %381, %380 : vector<2x128xf32>
    %cst_139 = arith.constant 9.99999968E-21 : f32
    %cst_140 = arith.constant 1.000000e+00 : f32
    %383 = vector.broadcast %cst_139 : f32 to vector<2x128xf32>
    %384 = arith.maximumf %383, %382 : vector<2x128xf32>
    %385 = vector.broadcast %cst_140 : f32 to vector<2x128xf32>
    %386 = arith.minimumf %385, %384 : vector<2x128xf32>
    %387 = arith.subf %282, %332 : vector<2x128xf32>
    %388 = vector.broadcast %6 : vector<1x128xf32> to vector<2x128xf32>
    %389 = arith.mulf %387, %388 : vector<2x128xf32>
    %390 = arith.mulf %389, %389 : vector<2x128xf32>
    %cst_141 = arith.constant dense<0.000000e+00> : vector<2xf32>
    %391 = vector.multi_reduction <add>, %390, %cst_141 [1] : vector<2x128xf32> to vector<2xf32>
    %392 = vector.shape_cast %391 : vector<2xf32> to vector<2x1xf32>
    %393 = arith.subf %286, %355 : vector<2x128xf32>
    %394 = vector.broadcast %6 : vector<1x128xf32> to vector<2x128xf32>
    %395 = arith.mulf %393, %394 : vector<2x128xf32>
    %396 = arith.mulf %395, %395 : vector<2x128xf32>
    %cst_142 = arith.constant dense<0.000000e+00> : vector<2xf32>
    %397 = vector.multi_reduction <add>, %396, %cst_142 [1] : vector<2x128xf32> to vector<2xf32>
    %398 = vector.shape_cast %397 : vector<2xf32> to vector<2x1xf32>
    %399 = arith.addf %392, %398 : vector<2x1xf32>
    %400 = arith.subf %290, %379 : vector<2x128xf32>
    %401 = vector.broadcast %6 : vector<1x128xf32> to vector<2x128xf32>
    %402 = arith.mulf %400, %401 : vector<2x128xf32>
    %403 = arith.mulf %402, %402 : vector<2x128xf32>
    %cst_143 = arith.constant dense<0.000000e+00> : vector<2xf32>
    %404 = vector.multi_reduction <add>, %403, %cst_143 [1] : vector<2x128xf32> to vector<2xf32>
    %405 = vector.shape_cast %404 : vector<2xf32> to vector<2x1xf32>
    %406 = arith.addf %399, %405 : vector<2x1xf32>
    %407 = arith.subf %294, %386 : vector<2x128xf32>
    %408 = vector.broadcast %6 : vector<1x128xf32> to vector<2x128xf32>
    %409 = arith.mulf %407, %408 : vector<2x128xf32>
    %410 = arith.mulf %409, %409 : vector<2x128xf32>
    %cst_144 = arith.constant dense<0.000000e+00> : vector<2xf32>
    %411 = vector.multi_reduction <add>, %410, %cst_144 [1] : vector<2x128xf32> to vector<2xf32>
    %412 = vector.shape_cast %411 : vector<2xf32> to vector<2x1xf32>
    %413 = arith.addf %406, %412 : vector<2x1xf32>
    %c0_145 = arith.constant 0 : index
    %c0_146 = arith.constant 0 : index
    %414 = vector.load %arg7[%c0_145, %c0_146] : memref<2x1xf32, #tpu.memory_space<vmem>>, vector<2x1xf32>
    tpu.vector_store %arg7[%c0_145, %c0_146], %413 {strides = array<i32>} : memref<2x1xf32, #tpu.memory_space<vmem>>, vector<2x1xf32>,
    return
  }
  func.func @transform_0(%arg0: i32) -> (i32, i32) {
    %c0_i32 = arith.constant 0 : i32
    %c0_i32_0 = arith.constant 0 : i32
    %c0_i32_1 = arith.constant 0 : i32
    return %c0_i32, %c0_i32_0 : i32, i32
  }
  func.func @transform_1(%arg0: i32) -> (i32, i32) {
    %c0_i32 = arith.constant 0 : i32
    %c0_i32_0 = arith.constant 0 : i32
    return %arg0, %c0_i32 : i32, i32
  }
  func.func @transform_2(%arg0: i32) -> (i32, i32) {
    %c0_i32 = arith.constant 0 : i32
    %c0_i32_0 = arith.constant 0 : i32
    return %arg0, %c0_i32 : i32, i32
  }
  func.func @transform_3(%arg0: i32) -> (i32, i32) {
    %c0_i32 = arith.constant 0 : i32
    %c0_i32_0 = arith.constant 0 : i32
    %c0_i32_1 = arith.constant 0 : i32
    return %c0_i32, %c0_i32_0 : i32, i32
  }
  func.func @transform_4(%arg0: i32) -> (i32, i32) {
    %c0_i32 = arith.constant 0 : i32
    %c0_i32_0 = arith.constant 0 : i32
    %c0_i32_1 = arith.constant 0 : i32
    return %c0_i32, %c0_i32_0 : i32, i32
  }
  func.func @transform_5(%arg0: i32) -> (i32, i32, i32) {
    %c0_i32 = arith.constant 0 : i32
    %c0_i32_0 = arith.constant 0 : i32
    %c0_i32_1 = arith.constant 0 : i32
    return %c0_i32, %arg0, %c0_i32_0 : i32, i32, i32
  }
  func.func @transform_6(%arg0: i32) -> (i32, i32) {
    %c0_i32 = arith.constant 0 : i32
    %c0_i32_0 = arith.constant 0 : i32
    return %arg0, %c0_i32 : i32, i32
  }
}

</mosaic_0001>

<llo_original>
// kernel: tpu_custom_call.1
$region0: #{tpu_custom_call.1}
  #allocation0 [shape = 'u32[]', space=smem, size = 0x4, offset = 0x4, fixed_abs, tag = 'smem constant byte address 0x4 - core index']
  #allocation1 [shape = 'u32[144,128]{1,0:T(1,128)}', space=vmem, size = 0x12000, scoped, tag = 'internal scratch']
  #allocation2 [shape = 'f32[1,1]{1,0:T(1,128)S(6)}', space=smem, size = 0x200, scoped, tag = 'scoped memory for tpu_custom_call.1']
  %s0 = inlined_call_operand.<no memory space> [shape: f32[1,1], index: 0, kind: input, shape index: {}]
  %s1 = inlined_call_operand.vmem [shape: f32[2,128], index: 1, kind: input, shape index: {}]
  %s2 = inlined_call_operand.vmem [shape: f32[2,3], index: 2, kind: input, shape index: {}]
  %s3 = inlined_call_operand.hbm [shape: f32[20,128], index: 3, kind: input, shape index: {}]
  %s4 = inlined_call_operand.vmem [shape: f32[5,4], index: 4, kind: input, shape index: {}]
  %s5 = inlined_call_operand.hbm [shape: f32[3,2,128], index: 5, kind: output, shape index: {0}]
  %s6 = inlined_call_operand.vmem [shape: f32[2,1], index: 6, kind: output, shape index: {1}]
  %7 = xla_tuple %s5, %s6
  %s8 = sld [smem:[#allocation0]]
  $region53: #{tpu_custom_call.1} parent=0
    _
  %s10 = ssub.s32 1, %s8
  %s11 = scalar_select 0, %s10, %s8
  %12 = sst [smem:[#allocation2]] %s0
  $region1: #{tpu_custom_call.1} parent=0
    #allocation3 [shape = 'u8[12288]{0}', space=vmem, size = 0x3000, scoped, tag = 'input window, operand 3, single buffered']
    #allocation4 [shape = 's32[1]{0}', space=sflag, size = 0x4, scoped, tag = 'scoped memory for tpu_custom_call.1']
    #allocation5 [shape = 's32[1]{0}', space=sflag, size = 0x4, scoped, tag = 'scoped memory for tpu_custom_call.1']
    #allocation6 [shape = 's32[1]{0}', space=sflag, size = 0x4, scoped, tag = 'scoped memory for tpu_custom_call.1']
    #allocation7 [shape = 'u8[4096]{0}', space=smem, size = 0x1000, scoped, tag = 'input window, operand 4, single buffered']
    #allocation8 [shape = 'u8[3072]{0}', space=vmem, size = 0xc00, scoped, tag = 'output window, operand 0, single buffered']
    %13 = vsyncpa [#allocation4], 0
    %14 = vsyncpa [#allocation6], 0
    %15 = vsyncpa [#allocation5], 0
    // Predicated region
    $region2: #{tpu_custom_call.1} parent=1 // pred_check
      _
    $region3: #{tpu_custom_call.1} parent=1 // pred_check_branch
      %17 = sbr.rel (0) target = $region5
    $region4: #{tpu_custom_call.1} parent=1 // pred_region
      _
    $region5: #{tpu_custom_call.1} parent=1 // pred_fallthru
      _
    // Predicated region
    $region6: #{tpu_custom_call.1} parent=1 // pred_check
      _
    $region7: #{tpu_custom_call.1} parent=1 // pred_check_branch
      %19 = sbr.rel (0) target = $region9
    $region8: #{tpu_custom_call.1} parent=1 // pred_region
      _
    $region9: #{tpu_custom_call.1} parent=1 // pred_fallthru
      _
    // Predicated region
    $region10: #{tpu_custom_call.1} parent=1 // pred_check
      _
    $region11: #{tpu_custom_call.1} parent=1 // pred_check_branch
      %21 = sbr.rel (0) target = $region13
    $region12: #{tpu_custom_call.1} parent=1 // pred_region
      _
    $region13: #{tpu_custom_call.1} parent=1 // pred_fallthru
      _
    // Predicated region
    $region14: #{tpu_custom_call.1} parent=1 // pred_check
      _
    $region15: #{tpu_custom_call.1} parent=1 // pred_check_branch
      %23 = sbr.rel (0) target = $region17
    $region16: #{tpu_custom_call.1} parent=1 // pred_region
      %s25 = ssub.s32 384, 384
      %26 = vsyncadd [#allocation4], %s25
      %s27 = sshll.u32 [#allocation3], 4
      %s28 = int_to_ptr.vmem [resolvable:$true] %s27
      %33 = dma.hbm_to_vmem [thread:$0]  %s3, 384, %s28, [#allocation4], 128, 128, 8
    $region17: #{tpu_custom_call.1} parent=1 // pred_fallthru
      _
    // Predicated region
    $region18: #{tpu_custom_call.1} parent=1 // pred_check
      _
    $region19: #{tpu_custom_call.1} parent=1 // pred_check_branch
      %35 = sbr.rel (0) target = $region21
    $region20: #{tpu_custom_call.1} parent=1 // pred_region
      %s37 = ssub.s32 128, 128
      %38 = vsyncadd [#allocation6], %s37
      %s40 = sshll.u32 %s4, 4
      %s41 = int_to_ptr.vmem [resolvable:$true] %s40
      %43 = dma.vmem_to_smem %s41, 128, [#allocation7], [#allocation6]
    $region21: #{tpu_custom_call.1} parent=1 // pred_fallthru
      _
    // Predicated region
    $region22: #{tpu_custom_call.1} parent=1 // pred_check
      _
    $region23: #{tpu_custom_call.1} parent=1 // pred_check_branch
      %45 = sbr.rel (0) target = $region25
    $region24: #{tpu_custom_call.1} parent=1 // pred_region
      %46 = dma.done [#allocation4], 384
    $region25: #{tpu_custom_call.1} parent=1 // pred_fallthru
      _
    // Predicated region
    $region26: #{tpu_custom_call.1} parent=1 // pred_check
      _
    $region27: #{tpu_custom_call.1} parent=1 // pred_check_branch
      %48 = sbr.rel (0) target = $region29
    $region28: #{tpu_custom_call.1} parent=1 // pred_region
      %49 = dma.done [#allocation6], 128
    $region29: #{tpu_custom_call.1} parent=1 // pred_fallthru
      _
    %50 = sfence
    %s51 = sld [smem:[#allocation2]]
    %v52 = vld [vmem:[%s1] sm:$0x3]
    %v53 = vlaneseq
    %v54 = vand.u32 %v53, 127
    %vm55 = vcmp.lt.s32.totalorder %v54, 16
    %v56 = vsel %vm55, 1, 0
    %v57 = vcvt.s32.f32 %v56
    %v58 = vsel %vm55, 0.0, -1e+30
    %v59 = vsub.f32 %v52, 3.0
    %v60 = vmul.f32 %v59, %v59
    %v61 = vstv %s51
    %v62 = vmul.f32 %v60, %v61
    %v63 = vsub.f32 %v52, 2.0
    %v64 = vmul.f32 %v63, %v63
    %v65 = vmul.f32 %v64, %v61
    %v66 = vsub.f32 %v52, 1.0
    %v67 = vmul.f32 %v66, %v66
    %v68 = vmul.f32 %v67, %v61
    %v69 = vmul.f32 %v52, %v52
    %v70 = vmul.f32 %v69, %v61
    %v71 = vld [vmem:[%s2] sm:$0x3]
    %73 = vset.pattern.permute.xlu0 0
    %74 = vperm.xlu0 %73, %v71
    %v75 = vpop.permute.xlu0 %74
    %v77 = vsub.f32 %v75, %v52
    %v78 = vand.u32 2147483647, %v77
    %v79 = vsub.f32 0.0, %v78
    %v80 = vrcp.pop 0.1
    %v81 = vmul.f32 %v79, %v80
    %v82 = vxor.u32 %v81, 2147483648
    %v83 = vmul.f32 %v82, 1.442695
    %v84 = vpow.pop %v83
    %v85 = vadd.f32 %v84, 1.0
    %v86 = vrcp.pop %v85
    %v87 = vmul.f32 1.0, %v86
    %v88 = vadd.f32 %v87, 1e-20
    %v89 = vmul.f32 %v88, %v57
    %vm90 = vcmask 1041408
    %v91 = vsel %vm90, %v89, 0.0
    %92 = vadd.xlane.f32.xlu0 %v91
    %v93 = vpop.xlane.xlu0 %92
    %v94 = vrcp.pop %v93
    %v95 = vmul.f32 %v88, %v94
    %v96 = vmul.f32 %v95, 0.0625
    %97 = vset.pattern.permute.xlu0 1
    %98 = vperm.xlu0 %97, %v71
    %v99 = vpop.permute.xlu0 %98
    %v101 = vsub.f32 %v99, %v52
    %v102 = vand.u32 2147483647, %v101
    %v103 = vsub.f32 0.0, %v102
    %v104 = vmul.f32 %v103, %v80
    %v105 = vxor.u32 %v104, 2147483648
    %v106 = vmul.f32 %v105, 1.442695
    %v107 = vpow.pop %v106
    %v108 = vadd.f32 %v107, 1.0
    %v109 = vrcp.pop %v108
    %v110 = vmul.f32 1.0, %v109
    %v111 = vadd.f32 %v110, 1e-20
    %v112 = vmul.f32 %v111, %v57
    %v113 = vsel %vm90, %v112, 0.0
    %114 = vadd.xlane.f32.xlu0 %v113
    %v115 = vpop.xlane.xlu0 %114
    %v116 = vrcp.pop %v115
    %v117 = vmul.f32 %v111, %v116
    %v118 = vmul.f32 %v117, 0.0625
    %v119 = vadd.f32 %v96, %v118
    %120 = vset.pattern.permute.xlu0 2
    %121 = vperm.xlu0 %120, %v71
    %v122 = vpop.permute.xlu0 %121
    %v124 = vsub.f32 %v122, %v52
    %v125 = vand.u32 2147483647, %v124
    %v126 = vsub.f32 0.0, %v125
    %v127 = vmul.f32 %v126, %v80
    %v128 = vxor.u32 %v127, 2147483648
    %v129 = vmul.f32 %v128, 1.442695
    %v130 = vpow.pop %v129
    %v131 = vadd.f32 %v130, 1.0
    %v132 = vrcp.pop %v131
    %v133 = vmul.f32 1.0, %v132
    %v134 = vadd.f32 %v133, 1e-20
    %v135 = vmul.f32 %v134, %v57
    %v136 = vsel %vm90, %v135, 0.0
    %137 = vadd.xlane.f32.xlu0 %v136
    %v138 = vpop.xlane.xlu0 %137
    %v139 = vrcp.pop %v138
    %v140 = vmul.f32 %v134, %v139
    %v141 = vmul.f32 %v140, 0.0625
    %v142 = vadd.f32 %v119, %v141
    %v143 = vsub.f32 0.0625, %v142
    %v144 = vmax.f32 %v143, 1e-20
    %v145 = vmin.f32 %v144, 1.0
    %v146 = vlog2.pop %v96
    %v147 = vmul.f32 %v146, 0.6931472
    %v148 = vadd.f32 %v62, %v147
    %v149 = vlog2.pop %v118
    %v150 = vmul.f32 %v149, 0.6931472
    %v151 = vadd.f32 %v65, %v150
    %v152 = vlog2.pop %v141
    %v153 = vmul.f32 %v152, 0.6931472
    %v154 = vadd.f32 %v68, %v153
    %v155 = vlog2.pop %v145
    %v156 = vmul.f32 %v155, 0.6931472
    %v157 = vadd.f32 %v70, %v156
    %v158 = vld [vmem:[#allocation3] sm:$0x1]
    %v159 = vlaneseq
    %v160 = vshrl.u32 %v159, 7
    %v161 = vsub.s32 0, %v160
    %v162 = vrot.slane %v158, %v161
    %v163 = vmul.f32 %v148, %v162
    %v164 = vld [vmem:[#allocation3 + $0x1] sm:$0x1]
    %v165 = vlaneseq
    %v166 = vshrl.u32 %v165, 7
    %v167 = vsub.s32 0, %v166
    %v168 = vrot.slane %v164, %v167
    %v169 = vmul.f32 %v151, %v168
    %v170 = vadd.f32 %v163, %v169
    %v171 = vld [vmem:[#allocation3 + $0x2] sm:$0x1]
    %v172 = vlaneseq
    %v173 = vshrl.u32 %v172, 7
    %v174 = vsub.s32 0, %v173
    %v175 = vrot.slane %v171, %v174
    %v176 = vmul.f32 %v154, %v175
    %v177 = vadd.f32 %v170, %v176
    %v178 = vld [vmem:[#allocation3 + $0x3] sm:$0x1]
    %v179 = vlaneseq
    %v180 = vshrl.u32 %v179, 7
    %v181 = vsub.s32 0, %v180
    %v182 = vrot.slane %v178, %v181
    %v183 = vmul.f32 %v157, %v182
    %v184 = vadd.f32 %v177, %v183
    %v185 = vsel %vm90, %v184, 0.0
    %186 = vadd.xlane.f32.xlu0 %v185
    %v187 = vpop.xlane.xlu0 %186
    %v188 = vld [vmem:[#allocation3 + $0x4] sm:$0x1]
    %v189 = vlaneseq
    %v190 = vshrl.u32 %v189, 7
    %v191 = vsub.s32 0, %v190
    %v192 = vrot.slane %v188, %v191
    %v193 = vmul.f32 %v148, %v192
    %v194 = vld [vmem:[#allocation3 + $0x5] sm:$0x1]
    %v195 = vlaneseq
    %v196 = vshrl.u32 %v195, 7
    %v197 = vsub.s32 0, %v196
    %v198 = vrot.slane %v194, %v197
    %v199 = vmul.f32 %v151, %v198
    %v200 = vadd.f32 %v193, %v199
    %v201 = vld [vmem:[#allocation3 + $0x6] sm:$0x1]
    %v202 = vlaneseq
    %v203 = vshrl.u32 %v202, 7
    %v204 = vsub.s32 0, %v203
    %v205 = vrot.slane %v201, %v204
    %v206 = vmul.f32 %v154, %v205
    %v207 = vadd.f32 %v200, %v206
    %v208 = vld [vmem:[#allocation3 + $0x7] sm:$0x1]
    %v209 = vlaneseq
    %v210 = vshrl.u32 %v209, 7
    %v211 = vsub.s32 0, %v210
    %v212 = vrot.slane %v208, %v211
    %v213 = vmul.f32 %v157, %v212
    %v214 = vadd.f32 %v207, %v213
    %v215 = vsel %vm90, %v214, 0.0
    %216 = vadd.xlane.f32.xlu0 %v215
    %v217 = vpop.xlane.xlu0 %216
    %v218 = vld [vmem:[#allocation3 + $0x8] sm:$0x1]
    %v219 = vlaneseq
    %v220 = vshrl.u32 %v219, 7
    %v221 = vsub.s32 0, %v220
    %v222 = vrot.slane %v218, %v221
    %v223 = vmul.f32 %v148, %v222
    %v224 = vld [vmem:[#allocation3 + $0x9] sm:$0x1]
    %v225 = vlaneseq
    %v226 = vshrl.u32 %v225, 7
    %v227 = vsub.s32 0, %v226
    %v228 = vrot.slane %v224, %v227
    %v229 = vmul.f32 %v151, %v228
    %v230 = vadd.f32 %v223, %v229
    %v231 = vld [vmem:[#allocation3 + $0xa] sm:$0x1]
    %v232 = vlaneseq
    %v233 = vshrl.u32 %v232, 7
    %v234 = vsub.s32 0, %v233
    %v235 = vrot.slane %v231, %v234
    %v236 = vmul.f32 %v154, %v235
    %v237 = vadd.f32 %v230, %v236
    %v238 = vld [vmem:[#allocation3 + $0xb] sm:$0x1]
    %v239 = vlaneseq
    %v240 = vshrl.u32 %v239, 7
    %v241 = vsub.s32 0, %v240
    %v242 = vrot.slane %v238, %v241
    %v243 = vmul.f32 %v157, %v242
    %v244 = vadd.f32 %v237, %v243
    %v245 = vsel %vm90, %v244, 0.0
    %246 = vadd.xlane.f32.xlu0 %v245
    %v247 = vpop.xlane.xlu0 %246
    %v248 = vld [vmem:[#allocation3 + $0xc] sm:$0x1]
    %v249 = vlaneseq
    %v250 = vshrl.u32 %v249, 7
    %v251 = vsub.s32 0, %v250
    %v252 = vrot.slane %v248, %v251
    %v253 = vmul.f32 %v148, %v252
    %v254 = vld [vmem:[#allocation3 + $0xd] sm:$0x1]
    %v255 = vlaneseq
    %v256 = vshrl.u32 %v255, 7
    %v257 = vsub.s32 0, %v256
    %v258 = vrot.slane %v254, %v257
    %v259 = vmul.f32 %v151, %v258
    %v260 = vadd.f32 %v253, %v259
    %v261 = vld [vmem:[#allocation3 + $0xe] sm:$0x1]
    %v262 = vlaneseq
    %v263 = vshrl.u32 %v262, 7
    %v264 = vsub.s32 0, %v263
    %v265 = vrot.slane %v261, %v264
    %v266 = vmul.f32 %v154, %v265
    %v267 = vadd.f32 %v260, %v266
    %v268 = vld [vmem:[#allocation3 + $0xf] sm:$0x1]
    %v269 = vlaneseq
    %v270 = vshrl.u32 %v269, 7
    %v271 = vsub.s32 0, %v270
    %v272 = vrot.slane %v268, %v271
    %v273 = vmul.f32 %v157, %v272
    %v274 = vadd.f32 %v267, %v273
    %v275 = vsel %vm90, %v274, 0.0
    %276 = vadd.xlane.f32.xlu0 %v275
    %v277 = vpop.xlane.xlu0 %276
    %v278 = vld [vmem:[#allocation3 + $0x10] sm:$0x1]
    %v279 = vlaneseq
    %v280 = vshrl.u32 %v279, 7
    %v281 = vsub.s32 0, %v280
    %v282 = vrot.slane %v278, %v281
    %v283 = vmul.f32 %v148, %v282
    %v284 = vld [vmem:[#allocation3 + $0x11] sm:$0x1]
    %v285 = vlaneseq
    %v286 = vshrl.u32 %v285, 7
    %v287 = vsub.s32 0, %v286
    %v288 = vrot.slane %v284, %v287
    %v289 = vmul.f32 %v151, %v288
    %v290 = vadd.f32 %v283, %v289
    %v291 = vld [vmem:[#allocation3 + $0x12] sm:$0x1]
    %v292 = vlaneseq
    %v293 = vshrl.u32 %v292, 7
    %v294 = vsub.s32 0, %v293
    %v295 = vrot.slane %v291, %v294
    %v296 = vmul.f32 %v154, %v295
    %v297 = vadd.f32 %v290, %v296
    %v298 = vld [vmem:[#allocation3 + $0x13] sm:$0x1]
    %v299 = vlaneseq
    %v300 = vshrl.u32 %v299, 7
    %v301 = vsub.s32 0, %v300
    %v302 = vrot.slane %v298, %v301
    %v303 = vmul.f32 %v157, %v302
    %v304 = vadd.f32 %v297, %v303
    %v305 = vsel %vm90, %v304, 0.0
    %306 = vadd.xlane.f32.xlu0 %v305
    %v307 = vpop.xlane.xlu0 %306
    %s308 = sld [smem:[#allocation7]]
    %v309 = vstv %s308
    %v310 = vmul.f32 %v187, %v309
    %s311 = sld [smem:[#allocation7 + $0x80]]
    %v312 = vstv %s311
    %v313 = vmul.f32 %v217, %v312
    %v314 = vadd.f32 %v310, %v313
    %s315 = sld [smem:[#allocation7 + $0x100]]
    %v316 = vstv %s315
    %v317 = vmul.f32 %v247, %v316
    %v318 = vadd.f32 %v314, %v317
    %s319 = sld [smem:[#allocation7 + $0x180]]
    %v320 = vstv %s319
    %v321 = vmul.f32 %v277, %v320
    %v322 = vadd.f32 %v318, %v321
    %s323 = sld [smem:[#allocation7 + $0x200]]
    %v324 = vstv %s323
    %v325 = vmul.f32 %v307, %v324
    %v326 = vadd.f32 %v322, %v325
    %s327 = sld [smem:[#allocation7 + $0x1]]
    %v328 = vstv %s327
    %v329 = vmul.f32 %v187, %v328
    %s330 = sld [smem:[#allocation7 + $0x81]]
    %v331 = vstv %s330
    %v332 = vmul.f32 %v217, %v331
    %v333 = vadd.f32 %v329, %v332
    %s334 = sld [smem:[#allocation7 + $0x101]]
    %v335 = vstv %s334
    %v336 = vmul.f32 %v247, %v335
    %v337 = vadd.f32 %v333, %v336
    %s338 = sld [smem:[#allocation7 + $0x181]]
    %v339 = vstv %s338
    %v340 = vmul.f32 %v277, %v339
    %v341 = vadd.f32 %v337, %v340
    %s342 = sld [smem:[#allocation7 + $0x201]]
    %v343 = vstv %s342
    %v344 = vmul.f32 %v307, %v343
    %v345 = vadd.f32 %v341, %v344
    %s346 = sld [smem:[#allocation7 + $0x2]]
    %v347 = vstv %s346
    %v348 = vmul.f32 %v187, %v347
    %s349 = sld [smem:[#allocation7 + $0x82]]
    %v350 = vstv %s349
    %v351 = vmul.f32 %v217, %v350
    %v352 = vadd.f32 %v348, %v351
    %s353 = sld [smem:[#allocation7 + $0x102]]
    %v354 = vstv %s353
    %v355 = vmul.f32 %v247, %v354
    %v356 = vadd.f32 %v352, %v355
    %s357 = sld [smem:[#allocation7 + $0x182]]
    %v358 = vstv %s357
    %v359 = vmul.f32 %v277, %v358
    %v360 = vadd.f32 %v356, %v359
    %s361 = sld [smem:[#allocation7 + $0x202]]
    %v362 = vstv %s361
    %v363 = vmul.f32 %v307, %v362
    %v364 = vadd.f32 %v360, %v363
    %s365 = sld [smem:[#allocation7 + $0x3]]
    %v366 = vstv %s365
    %v367 = vmul.f32 %v187, %v366
    %s368 = sld [smem:[#allocation7 + $0x83]]
    %v369 = vstv %s368
    %v370 = vmul.f32 %v217, %v369
    %v371 = vadd.f32 %v367, %v370
    %s372 = sld [smem:[#allocation7 + $0x103]]
    %v373 = vstv %s372
    %v374 = vmul.f32 %v247, %v373
    %v375 = vadd.f32 %v371, %v374
    %s376 = sld [smem:[#allocation7 + $0x183]]
    %v377 = vstv %s376
    %v378 = vmul.f32 %v277, %v377
    %v379 = vadd.f32 %v375, %v378
    %s380 = sld [smem:[#allocation7 + $0x203]]
    %v381 = vstv %s380
    %v382 = vmul.f32 %v307, %v381
    %v383 = vadd.f32 %v379, %v382
    loop: start=0, step=1, limit=25
    $region30: #{tpu_custom_call.1} parent=1 // loop_pre_header
      _
    $region31: #{tpu_custom_call.1} parent=1 // loop_header
      %s385 = sphi 0, %s389
      %p386 = scmp.ge.s32.totalorder %s385, 25
      %v390 = vphi 0.0, %v1002
      %v391 = vphi %v326, %v1016
      %v392 = vphi %v345, %v1030
      %v393 = vphi %v364, %v1044
      %v394 = vphi %v383, %v1058
    $region32: #{tpu_custom_call.1} parent=1 // loop_header_branch
      %388 = sbr.rel (%p386) target = $region36
    $region33: #{tpu_custom_call.1} parent=1 // loop_body
      %v395 = vsub.f32 %v391, %v62
      %v396 = vsub.f32 %v392, %v65
      %v397 = vsub.f32 %v393, %v68
      %v398 = vsub.f32 %v394, %v70
      %v399 = vmax.f32 %v395, %v396
      %v400 = vmax.f32 %v399, %v397
      %v401 = vmax.f32 %v400, %v398
      %v402 = vsub.f32 %v395, %v401
      %v403 = vmul.f32 %v402, 1.442695
      %v404 = vpow.pop %v403
      %v405 = vsub.f32 %v396, %v401
      %v406 = vmul.f32 %v405, 1.442695
      %v407 = vpow.pop %v406
      %v408 = vadd.f32 %v404, %v407
      %v409 = vsub.f32 %v397, %v401
      %v410 = vmul.f32 %v409, 1.442695
      %v411 = vpow.pop %v410
      %v412 = vadd.f32 %v408, %v411
      %v413 = vsub.f32 %v398, %v401
      %v414 = vmul.f32 %v413, 1.442695
      %v415 = vpow.pop %v414
      %v416 = vadd.f32 %v412, %v415
      %v417 = vsub.f32 -2.7725887, %v401
      %v418 = vlog2.pop %v416
      %v419 = vmul.f32 %v418, 0.6931472
      %v420 = vsub.f32 %v417, %v419
      %v421 = vadd.f32 %v420, %v58
      %v422 = vsub.f32 %v421, %v62
      %v423 = vsel %vm90, %v422, -inf
      %424 = vmax.xlane.f32.xlu0 %v423
      %v425 = vpop.xlane.xlu0 %424
      %v426 = vsub.f32 %v422, %v425
      %v427 = vmul.f32 %v426, 1.442695
      %v428 = vpow.pop %v427
      %v429 = vsel %vm90, %v428, 0.0
      %430 = vadd.xlane.f32.xlu0 %v429
      %v431 = vpop.xlane.xlu0 %430
      %v432 = vsub.f32 -2.7725887, %v425
      %v433 = vlog2.pop %v431
      %v434 = vmul.f32 %v433, 0.6931472
      %v435 = vsub.f32 %v432, %v434
      %v436 = vsub.f32 %v421, %v65
      %v437 = vsel %vm90, %v436, -inf
      %438 = vmax.xlane.f32.xlu0 %v437
      %v439 = vpop.xlane.xlu0 %438
      %v440 = vsub.f32 %v436, %v439
      %v441 = vmul.f32 %v440, 1.442695
      %v442 = vpow.pop %v441
      %v443 = vsel %vm90, %v442, 0.0
      %444 = vadd.xlane.f32.xlu0 %v443
      %v445 = vpop.xlane.xlu0 %444
      %v446 = vsub.f32 -2.7725887, %v439
      %v447 = vlog2.pop %v445
      %v448 = vmul.f32 %v447, 0.6931472
      %v449 = vsub.f32 %v446, %v448
      %v450 = vsub.f32 %v421, %v68
      %v451 = vsel %vm90, %v450, -inf
      %452 = vmax.xlane.f32.xlu0 %v451
      %v453 = vpop.xlane.xlu0 %452
      %v454 = vsub.f32 %v450, %v453
      %v455 = vmul.f32 %v454, 1.442695
      %v456 = vpow.pop %v455
      %v457 = vsel %vm90, %v456, 0.0
      %458 = vadd.xlane.f32.xlu0 %v457
      %v459 = vpop.xlane.xlu0 %458
      %v460 = vsub.f32 -2.7725887, %v453
      %v461 = vlog2.pop %v459
      %v462 = vmul.f32 %v461, 0.6931472
      %v463 = vsub.f32 %v460, %v462
      %v464 = vsub.f32 %v421, %v70
      %v465 = vsel %vm90, %v464, -inf
      %466 = vmax.xlane.f32.xlu0 %v465
      %v467 = vpop.xlane.xlu0 %466
      %v468 = vsub.f32 %v464, %v467
      %v469 = vmul.f32 %v468, 1.442695
      %v470 = vpow.pop %v469
      %v471 = vsel %vm90, %v470, 0.0
      %472 = vadd.xlane.f32.xlu0 %v471
      %v473 = vpop.xlane.xlu0 %472
      %v474 = vsub.f32 -0.20763937, %v467
      %v475 = vlog2.pop %v473
      %v476 = vmul.f32 %v475, 0.6931472
      %v477 = vsub.f32 %v474, %v476
      %v478 = vsub.f32 %v435, %v62
      %v479 = vsub.f32 %v449, %v65
      %v480 = vsub.f32 %v463, %v68
      %v481 = vsub.f32 %v477, %v70
      %v482 = vmax.f32 %v478, %v479
      %v483 = vmax.f32 %v482, %v480
      %v484 = vmax.f32 %v483, %v481
      %v485 = vsub.f32 %v478, %v484
      %v486 = vmul.f32 %v485, 1.442695
      %v487 = vpow.pop %v486
      %v488 = vsub.f32 %v479, %v484
      %v489 = vmul.f32 %v488, 1.442695
      %v490 = vpow.pop %v489
      %v491 = vadd.f32 %v487, %v490
      %v492 = vsub.f32 %v480, %v484
      %v493 = vmul.f32 %v492, 1.442695
      %v494 = vpow.pop %v493
      %v495 = vadd.f32 %v491, %v494
      %v496 = vsub.f32 %v481, %v484
      %v497 = vmul.f32 %v496, 1.442695
      %v498 = vpow.pop %v497
      %v499 = vadd.f32 %v495, %v498
      %v500 = vsub.f32 -2.7725887, %v484
      %v501 = vlog2.pop %v499
      %v502 = vmul.f32 %v501, 0.6931472
      %v503 = vsub.f32 %v500, %v502
      %v504 = vadd.f32 %v503, %v58
      %v505 = vsub.f32 %v504, %v62
      %v506 = vsel %vm90, %v505, -inf
      %507 = vmax.xlane.f32.xlu0 %v506
      %v508 = vpop.xlane.xlu0 %507
      %v509 = vsub.f32 %v505, %v508
      %v510 = vmul.f32 %v509, 1.442695
      %v511 = vpow.pop %v510
      %v512 = vsel %vm90, %v511, 0.0
      %513 = vadd.xlane.f32.xlu0 %v512
      %v514 = vpop.xlane.xlu0 %513
      %v515 = vsub.f32 -2.7725887, %v508
      %v516 = vlog2.pop %v514
      %v517 = vmul.f32 %v516, 0.6931472
      %v518 = vsub.f32 %v515, %v517
      %v519 = vsub.f32 %v504, %v65
      %v520 = vsel %vm90, %v519, -inf
      %521 = vmax.xlane.f32.xlu0 %v520
      %v522 = vpop.xlane.xlu0 %521
      %v523 = vsub.f32 %v519, %v522
      %v524 = vmul.f32 %v523, 1.442695
      %v525 = vpow.pop %v524
      %v526 = vsel %vm90, %v525, 0.0
      %527 = vadd.xlane.f32.xlu0 %v526
      %v528 = vpop.xlane.xlu0 %527
      %v529 = vsub.f32 -2.7725887, %v522
      %v530 = vlog2.pop %v528
      %v531 = vmul.f32 %v530, 0.6931472
      %v532 = vsub.f32 %v529, %v531
      %v533 = vsub.f32 %v504, %v68
      %v534 = vsel %vm90, %v533, -inf
      %535 = vmax.xlane.f32.xlu0 %v534
      %v536 = vpop.xlane.xlu0 %535
      %v537 = vsub.f32 %v533, %v536
      %v538 = vmul.f32 %v537, 1.442695
      %v539 = vpow.pop %v538
      %v540 = vsel %vm90, %v539, 0.0
      %541 = vadd.xlane.f32.xlu0 %v540
      %v542 = vpop.xlane.xlu0 %541
      %v543 = vsub.f32 -2.7725887, %v536
      %v544 = vlog2.pop %v542
      %v545 = vmul.f32 %v544, 0.6931472
      %v546 = vsub.f32 %v543, %v545
      %v547 = vsub.f32 %v504, %v70
      %v548 = vsel %vm90, %v547, -inf
      %549 = vmax.xlane.f32.xlu0 %v548
      %v550 = vpop.xlane.xlu0 %549
      %v551 = vsub.f32 %v547, %v550
      %v552 = vmul.f32 %v551, 1.442695
      %v553 = vpow.pop %v552
      %v554 = vsel %vm90, %v553, 0.0
      %555 = vadd.xlane.f32.xlu0 %v554
      %v556 = vpop.xlane.xlu0 %555
      %v557 = vsub.f32 -0.20763937, %v550
      %v558 = vlog2.pop %v556
      %v559 = vmul.f32 %v558, 0.6931472
      %v560 = vsub.f32 %v557, %v559
      %v561 = vsub.f32 %v518, %v62
      %v562 = vsub.f32 %v532, %v65
      %v563 = vsub.f32 %v546, %v68
      %v564 = vsub.f32 %v560, %v70
      %v565 = vmax.f32 %v561, %v562
      %v566 = vmax.f32 %v565, %v563
      %v567 = vmax.f32 %v566, %v564
      %v568 = vsub.f32 %v561, %v567
      %v569 = vmul.f32 %v568, 1.442695
      %v570 = vpow.pop %v569
      %v571 = vsub.f32 %v562, %v567
      %v572 = vmul.f32 %v571, 1.442695
      %v573 = vpow.pop %v572
      %v574 = vadd.f32 %v570, %v573
      %v575 = vsub.f32 %v563, %v567
      %v576 = vmul.f32 %v575, 1.442695
      %v577 = vpow.pop %v576
      %v578 = vadd.f32 %v574, %v577
      %v579 = vsub.f32 %v564, %v567
      %v580 = vmul.f32 %v579, 1.442695
      %v581 = vpow.pop %v580
      %v582 = vadd.f32 %v578, %v581
      %v583 = vsub.f32 -2.7725887, %v567
      %v584 = vlog2.pop %v582
      %v585 = vmul.f32 %v584, 0.6931472
      %v586 = vsub.f32 %v583, %v585
      %v587 = vadd.f32 %v586, %v58
      %v588 = vsub.f32 %v587, %v62
      %v589 = vsel %vm90, %v588, -inf
      %590 = vmax.xlane.f32.xlu0 %v589
      %v591 = vpop.xlane.xlu0 %590
      %v592 = vsub.f32 %v588, %v591
      %v593 = vmul.f32 %v592, 1.442695
      %v594 = vpow.pop %v593
      %v595 = vsel %vm90, %v594, 0.0
      %596 = vadd.xlane.f32.xlu0 %v595
      %v597 = vpop.xlane.xlu0 %596
      %v598 = vsub.f32 -2.7725887, %v591
      %v599 = vlog2.pop %v597
      %v600 = vmul.f32 %v599, 0.6931472
      %v601 = vsub.f32 %v598, %v600
      %v602 = vsub.f32 %v587, %v65
      %v603 = vsel %vm90, %v602, -inf
      %604 = vmax.xlane.f32.xlu0 %v603
      %v605 = vpop.xlane.xlu0 %604
      %v606 = vsub.f32 %v602, %v605
      %v607 = vmul.f32 %v606, 1.442695
      %v608 = vpow.pop %v607
      %v609 = vsel %vm90, %v608, 0.0
      %610 = vadd.xlane.f32.xlu0 %v609
      %v611 = vpop.xlane.xlu0 %610
      %v612 = vsub.f32 -2.7725887, %v605
      %v613 = vlog2.pop %v611
      %v614 = vmul.f32 %v613, 0.6931472
      %v615 = vsub.f32 %v612, %v614
      %v616 = vsub.f32 %v587, %v68
      %v617 = vsel %vm90, %v616, -inf
      %618 = vmax.xlane.f32.xlu0 %v617
      %v619 = vpop.xlane.xlu0 %618
      %v620 = vsub.f32 %v616, %v619
      %v621 = vmul.f32 %v620, 1.442695
      %v622 = vpow.pop %v621
      %v623 = vsel %vm90, %v622, 0.0
      %624 = vadd.xlane.f32.xlu0 %v623
      %v625 = vpop.xlane.xlu0 %624
      %v626 = vsub.f32 -2.7725887, %v619
      %v627 = vlog2.pop %v625
      %v628 = vmul.f32 %v627, 0.6931472
      %v629 = vsub.f32 %v626, %v628
      %v630 = vsub.f32 %v587, %v70
      %v631 = vsel %vm90, %v630, -inf
      %632 = vmax.xlane.f32.xlu0 %v631
      %v633 = vpop.xlane.xlu0 %632
      %v634 = vsub.f32 %v630, %v633
      %v635 = vmul.f32 %v634, 1.442695
      %v636 = vpow.pop %v635
      %v637 = vsel %vm90, %v636, 0.0
      %638 = vadd.xlane.f32.xlu0 %v637
      %v639 = vpop.xlane.xlu0 %638
      %v640 = vsub.f32 -0.20763937, %v633
      %v641 = vlog2.pop %v639
      %v642 = vmul.f32 %v641, 0.6931472
      %v643 = vsub.f32 %v640, %v642
      %v644 = vsub.f32 %v601, %v62
      %v645 = vsub.f32 %v615, %v65
      %v646 = vsub.f32 %v629, %v68
      %v647 = vsub.f32 %v643, %v70
      %v648 = vmax.f32 %v644, %v645
      %v649 = vmax.f32 %v648, %v646
      %v650 = vmax.f32 %v649, %v647
      %v651 = vsub.f32 %v644, %v650
      %v652 = vmul.f32 %v651, 1.442695
      %v653 = vpow.pop %v652
      %v654 = vsub.f32 %v645, %v650
      %v655 = vmul.f32 %v654, 1.442695
      %v656 = vpow.pop %v655
      %v657 = vadd.f32 %v653, %v656
      %v658 = vsub.f32 %v646, %v650
      %v659 = vmul.f32 %v658, 1.442695
      %v660 = vpow.pop %v659
      %v661 = vadd.f32 %v657, %v660
      %v662 = vsub.f32 %v647, %v650
      %v663 = vmul.f32 %v662, 1.442695
      %v664 = vpow.pop %v663
      %v665 = vadd.f32 %v661, %v664
      %v666 = vsub.f32 -2.7725887, %v650
      %v667 = vlog2.pop %v665
      %v668 = vmul.f32 %v667, 0.6931472
      %v669 = vsub.f32 %v666, %v668
      %v670 = vadd.f32 %v669, %v58
      %v671 = vsub.f32 %v670, %v62
      %v672 = vsel %vm90, %v671, -inf
      %673 = vmax.xlane.f32.xlu0 %v672
      %v674 = vpop.xlane.xlu0 %673
      %v675 = vsub.f32 %v671, %v674
      %v676 = vmul.f32 %v675, 1.442695
      %v677 = vpow.pop %v676
      %v678 = vsel %vm90, %v677, 0.0
      %679 = vadd.xlane.f32.xlu0 %v678
      %v680 = vpop.xlane.xlu0 %679
      %v681 = vsub.f32 -2.7725887, %v674
      %v682 = vlog2.pop %v680
      %v683 = vmul.f32 %v682, 0.6931472
      %v684 = vsub.f32 %v681, %v683
      %v685 = vsub.f32 %v670, %v65
      %v686 = vsel %vm90, %v685, -inf
      %687 = vmax.xlane.f32.xlu0 %v686
      %v688 = vpop.xlane.xlu0 %687
      %v689 = vsub.f32 %v685, %v688
      %v690 = vmul.f32 %v689, 1.442695
      %v691 = vpow.pop %v690
      %v692 = vsel %vm90, %v691, 0.0
      %693 = vadd.xlane.f32.xlu0 %v692
      %v694 = vpop.xlane.xlu0 %693
      %v695 = vsub.f32 -2.7725887, %v688
      %v696 = vlog2.pop %v694
      %v697 = vmul.f32 %v696, 0.6931472
      %v698 = vsub.f32 %v695, %v697
      %v699 = vsub.f32 %v670, %v68
      %v700 = vsel %vm90, %v699, -inf
      %701 = vmax.xlane.f32.xlu0 %v700
      %v702 = vpop.xlane.xlu0 %701
      %v703 = vsub.f32 %v699, %v702
      %v704 = vmul.f32 %v703, 1.442695
      %v705 = vpow.pop %v704
      %v706 = vsel %vm90, %v705, 0.0
      %707 = vadd.xlane.f32.xlu0 %v706
      %v708 = vpop.xlane.xlu0 %707
      %v709 = vsub.f32 -2.7725887, %v702
      %v710 = vlog2.pop %v708
      %v711 = vmul.f32 %v710, 0.6931472
      %v712 = vsub.f32 %v709, %v711
      %v713 = vsub.f32 %v670, %v70
      %v714 = vsel %vm90, %v713, -inf
      %715 = vmax.xlane.f32.xlu0 %v714
      %v716 = vpop.xlane.xlu0 %715
      %v717 = vsub.f32 %v713, %v716
      %v718 = vmul.f32 %v717, 1.442695
      %v719 = vpow.pop %v718
      %v720 = vsel %vm90, %v719, 0.0
      %721 = vadd.xlane.f32.xlu0 %v720
      %v722 = vpop.xlane.xlu0 %721
      %v723 = vsub.f32 -0.20763937, %v716
      %v724 = vlog2.pop %v722
      %v725 = vmul.f32 %v724, 0.6931472
      %v726 = vsub.f32 %v723, %v725
      %v727 = vsub.f32 %v684, %v62
      %v728 = vsub.f32 %v698, %v65
      %v729 = vsub.f32 %v712, %v68
      %v730 = vsub.f32 %v726, %v70
      %v731 = vmax.f32 %v727, %v728
      %v732 = vmax.f32 %v731, %v729
      %v733 = vmax.f32 %v732, %v730
      %v734 = vsub.f32 %v727, %v733
      %v735 = vmul.f32 %v734, 1.442695
      %v736 = vpow.pop %v735
      %v737 = vsub.f32 %v728, %v733
      %v738 = vmul.f32 %v737, 1.442695
      %v739 = vpow.pop %v738
      %v740 = vadd.f32 %v736, %v739
      %v741 = vsub.f32 %v729, %v733
      %v742 = vmul.f32 %v741, 1.442695
      %v743 = vpow.pop %v742
      %v744 = vadd.f32 %v740, %v743
      %v745 = vsub.f32 %v730, %v733
      %v746 = vmul.f32 %v745, 1.442695
      %v747 = vpow.pop %v746
      %v748 = vadd.f32 %v744, %v747
      %v749 = vsub.f32 -2.7725887, %v733
      %v750 = vlog2.pop %v748
      %v751 = vmul.f32 %v750, 0.6931472
      %v752 = vsub.f32 %v749, %v751
      %v753 = vadd.f32 %v752, %v58
      %v754 = vsub.f32 %v753, %v62
      %v755 = vsel %vm90, %v754, -inf
      %756 = vmax.xlane.f32.xlu0 %v755
      %v757 = vpop.xlane.xlu0 %756
      %v758 = vsub.f32 %v754, %v757
      %v759 = vmul.f32 %v758, 1.442695
      %v760 = vpow.pop %v759
      %v761 = vsel %vm90, %v760, 0.0
      %762 = vadd.xlane.f32.xlu0 %v761
      %v763 = vpop.xlane.xlu0 %762
      %v764 = vsub.f32 -2.7725887, %v757
      %v765 = vlog2.pop %v763
      %v766 = vmul.f32 %v765, 0.6931472
      %v767 = vsub.f32 %v764, %v766
      %v768 = vsub.f32 %v753, %v65
      %v769 = vsel %vm90, %v768, -inf
      %770 = vmax.xlane.f32.xlu0 %v769
      %v771 = vpop.xlane.xlu0 %770
      %v772 = vsub.f32 %v768, %v771
      %v773 = vmul.f32 %v772, 1.442695
      %v774 = vpow.pop %v773
      %v775 = vsel %vm90, %v774, 0.0
      %776 = vadd.xlane.f32.xlu0 %v775
      %v777 = vpop.xlane.xlu0 %776
      %v778 = vsub.f32 -2.7725887, %v771
      %v779 = vlog2.pop %v777
      %v780 = vmul.f32 %v779, 0.6931472
      %v781 = vsub.f32 %v778, %v780
      %v782 = vsub.f32 %v753, %v68
      %v783 = vsel %vm90, %v782, -inf
      %784 = vmax.xlane.f32.xlu0 %v783
      %v785 = vpop.xlane.xlu0 %784
      %v786 = vsub.f32 %v782, %v785
      %v787 = vmul.f32 %v786, 1.442695
      %v788 = vpow.pop %v787
      %v789 = vsel %vm90, %v788, 0.0
      %790 = vadd.xlane.f32.xlu0 %v789
      %v791 = vpop.xlane.xlu0 %790
      %v792 = vsub.f32 -2.7725887, %v785
      %v793 = vlog2.pop %v791
      %v794 = vmul.f32 %v793, 0.6931472
      %v795 = vsub.f32 %v792, %v794
      %v796 = vsub.f32 %v753, %v70
      %v797 = vsel %vm90, %v796, -inf
      %798 = vmax.xlane.f32.xlu0 %v797
      %v799 = vpop.xlane.xlu0 %798
      %v800 = vsub.f32 %v796, %v799
      %v801 = vmul.f32 %v800, 1.442695
      %v802 = vpow.pop %v801
      %v803 = vsel %vm90, %v802, 0.0
      %804 = vadd.xlane.f32.xlu0 %v803
      %v805 = vpop.xlane.xlu0 %804
      %v806 = vsub.f32 -0.20763937, %v799
      %v807 = vlog2.pop %v805
      %v808 = vmul.f32 %v807, 0.6931472
      %v809 = vsub.f32 %v806, %v808
      %v810 = vsub.f32 %v767, %v62
      %v811 = vsub.f32 %v781, %v65
      %v812 = vsub.f32 %v795, %v68
      %v813 = vsub.f32 %v809, %v70
      %v814 = vmax.f32 %v810, %v811
      %v815 = vmax.f32 %v814, %v812
      %v816 = vmax.f32 %v815, %v813
      %v817 = vsub.f32 %v810, %v816
      %v818 = vmul.f32 %v817, 1.442695
      %v819 = vpow.pop %v818
      %v820 = vsub.f32 %v811, %v816
      %v821 = vmul.f32 %v820, 1.442695
      %v822 = vpow.pop %v821
      %v823 = vadd.f32 %v819, %v822
      %v824 = vsub.f32 %v812, %v816
      %v825 = vmul.f32 %v824, 1.442695
      %v826 = vpow.pop %v825
      %v827 = vadd.f32 %v823, %v826
      %v828 = vsub.f32 %v813, %v816
      %v829 = vmul.f32 %v828, 1.442695
      %v830 = vpow.pop %v829
      %v831 = vadd.f32 %v827, %v830
      %v832 = vsub.f32 -2.7725887, %v816
      %v833 = vlog2.pop %v831
      %v834 = vmul.f32 %v833, 0.6931472
      %v835 = vsub.f32 %v832, %v834
      %v836 = vadd.f32 %v835, %v58
      %v837 = vsub.f32 %v836, %v62
      %v838 = vsel %vm90, %v837, -inf
      %839 = vmax.xlane.f32.xlu0 %v838
      %v840 = vpop.xlane.xlu0 %839
      %v841 = vsub.f32 %v837, %v840
      %v842 = vmul.f32 %v841, 1.442695
      %v843 = vpow.pop %v842
      %v844 = vsel %vm90, %v843, 0.0
      %845 = vadd.xlane.f32.xlu0 %v844
      %v846 = vpop.xlane.xlu0 %845
      %v847 = vsub.f32 -2.7725887, %v840
      %v848 = vlog2.pop %v846
      %v849 = vmul.f32 %v848, 0.6931472
      %v850 = vsub.f32 %v847, %v849
      %v851 = vsub.f32 %v836, %v65
      %v852 = vsel %vm90, %v851, -inf
      %853 = vmax.xlane.f32.xlu0 %v852
      %v854 = vpop.xlane.xlu0 %853
      %v855 = vsub.f32 %v851, %v854
      %v856 = vmul.f32 %v855, 1.442695
      %v857 = vpow.pop %v856
      %v858 = vsel %vm90, %v857, 0.0
      %859 = vadd.xlane.f32.xlu0 %v858
      %v860 = vpop.xlane.xlu0 %859
      %v861 = vsub.f32 -2.7725887, %v854
      %v862 = vlog2.pop %v860
      %v863 = vmul.f32 %v862, 0.6931472
      %v864 = vsub.f32 %v861, %v863
      %v865 = vsub.f32 %v836, %v68
      %v866 = vsel %vm90, %v865, -inf
      %867 = vmax.xlane.f32.xlu0 %v866
      %v868 = vpop.xlane.xlu0 %867
      %v869 = vsub.f32 %v865, %v868
      %v870 = vmul.f32 %v869, 1.442695
      %v871 = vpow.pop %v870
      %v872 = vsel %vm90, %v871, 0.0
      %873 = vadd.xlane.f32.xlu0 %v872
      %v874 = vpop.xlane.xlu0 %873
      %v875 = vsub.f32 -2.7725887, %v868
      %v876 = vlog2.pop %v874
      %v877 = vmul.f32 %v876, 0.6931472
      %v878 = vsub.f32 %v875, %v877
      %v879 = vsub.f32 %v836, %v70
      %v880 = vsel %vm90, %v879, -inf
      %881 = vmax.xlane.f32.xlu0 %v880
      %v882 = vpop.xlane.xlu0 %881
      %v883 = vsub.f32 %v879, %v882
      %v884 = vmul.f32 %v883, 1.442695
      %v885 = vpow.pop %v884
      %v886 = vsel %vm90, %v885, 0.0
      %887 = vadd.xlane.f32.xlu0 %v886
      %v888 = vpop.xlane.xlu0 %887
      %v889 = vsub.f32 -0.20763937, %v882
      %v890 = vlog2.pop %v888
      %v891 = vmul.f32 %v890, 0.6931472
      %v892 = vsub.f32 %v889, %v891
      %v893 = vsub.f32 %v850, %v62
      %v894 = vsub.f32 %v864, %v65
      %v895 = vsub.f32 %v878, %v68
      %v896 = vsub.f32 %v892, %v70
      %v897 = vmax.f32 %v893, %v894
      %v898 = vmax.f32 %v897, %v895
      %v899 = vmax.f32 %v898, %v896
      %v900 = vsub.f32 %v893, %v899
      %v901 = vmul.f32 %v900, 1.442695
      %v902 = vpow.pop %v901
      %v903 = vsub.f32 %v894, %v899
      %v904 = vmul.f32 %v903, 1.442695
      %v905 = vpow.pop %v904
      %v906 = vadd.f32 %v902, %v905
      %v907 = vsub.f32 %v895, %v899
      %v908 = vmul.f32 %v907, 1.442695
      %v909 = vpow.pop %v908
      %v910 = vadd.f32 %v906, %v909
      %v911 = vsub.f32 %v896, %v899
      %v912 = vmul.f32 %v911, 1.442695
      %v913 = vpow.pop %v912
      %v914 = vadd.f32 %v910, %v913
      %v915 = vsub.f32 -2.7725887, %v899
      %v916 = vlog2.pop %v914
      %v917 = vmul.f32 %v916, 0.6931472
      %v918 = vsub.f32 %v915, %v917
      %v919 = vadd.f32 %v918, %v58
      %v920 = vsub.f32 %v919, %v62
      %v921 = vsel %vm90, %v920, -inf
      %922 = vmax.xlane.f32.xlu0 %v921
      %v923 = vpop.xlane.xlu0 %922
      %v924 = vsub.f32 %v920, %v923
      %v925 = vmul.f32 %v924, 1.442695
      %v926 = vpow.pop %v925
      %v927 = vsel %vm90, %v926, 0.0
      %928 = vadd.xlane.f32.xlu0 %v927
      %v929 = vpop.xlane.xlu0 %928
      %v930 = vsub.f32 -2.7725887, %v923
      %v931 = vlog2.pop %v929
      %v932 = vmul.f32 %v931, 0.6931472
      %v933 = vsub.f32 %v930, %v932
      %v934 = vsub.f32 %v919, %v65
      %v935 = vsel %vm90, %v934, -inf
      %936 = vmax.xlane.f32.xlu0 %v935
      %v937 = vpop.xlane.xlu0 %936
      %v938 = vsub.f32 %v934, %v937
      %v939 = vmul.f32 %v938, 1.442695
      %v940 = vpow.pop %v939
      %v941 = vsel %vm90, %v940, 0.0
      %942 = vadd.xlane.f32.xlu0 %v941
      %v943 = vpop.xlane.xlu0 %942
      %v944 = vsub.f32 -2.7725887, %v937
      %v945 = vlog2.pop %v943
      %v946 = vmul.f32 %v945, 0.6931472
      %v947 = vsub.f32 %v944, %v946
      %v948 = vsub.f32 %v919, %v68
      %v949 = vsel %vm90, %v948, -inf
      %950 = vmax.xlane.f32.xlu0 %v949
      %v951 = vpop.xlane.xlu0 %950
      %v952 = vsub.f32 %v948, %v951
      %v953 = vmul.f32 %v952, 1.442695
      %v954 = vpow.pop %v953
      %v955 = vsel %vm90, %v954, 0.0
      %956 = vadd.xlane.f32.xlu0 %v955
      %v957 = vpop.xlane.xlu0 %956
      %v958 = vsub.f32 -2.7725887, %v951
      %v959 = vlog2.pop %v957
      %v960 = vmul.f32 %v959, 0.6931472
      %v961 = vsub.f32 %v958, %v960
      %v962 = vsub.f32 %v919, %v70
      %v963 = vsel %vm90, %v962, -inf
      %964 = vmax.xlane.f32.xlu0 %v963
      %v965 = vpop.xlane.xlu0 %964
      %v966 = vsub.f32 %v962, %v965
      %v967 = vmul.f32 %v966, 1.442695
      %v968 = vpow.pop %v967
      %v969 = vsel %vm90, %v968, 0.0
      %970 = vadd.xlane.f32.xlu0 %v969
      %v971 = vpop.xlane.xlu0 %970
      %v972 = vsub.f32 -0.20763937, %v965
      %v973 = vlog2.pop %v971
      %v974 = vmul.f32 %v973, 0.6931472
      %v975 = vsub.f32 %v972, %v974
      %v976 = vsub.f32 %v933, %v62
      %v977 = vsub.f32 %v947, %v65
      %v978 = vsub.f32 %v961, %v68
      %v979 = vsub.f32 %v975, %v70
      %v980 = vmax.f32 %v976, %v977
      %v981 = vmax.f32 %v980, %v978
      %v982 = vmax.f32 %v981, %v979
      %v983 = vsub.f32 %v976, %v982
      %v984 = vmul.f32 %v983, 1.442695
      %v985 = vpow.pop %v984
      %v986 = vsub.f32 %v977, %v982
      %v987 = vmul.f32 %v986, 1.442695
      %v988 = vpow.pop %v987
      %v989 = vadd.f32 %v985, %v988
      %v990 = vsub.f32 %v978, %v982
      %v991 = vmul.f32 %v990, 1.442695
      %v992 = vpow.pop %v991
      %v993 = vadd.f32 %v989, %v992
      %v994 = vsub.f32 %v979, %v982
      %v995 = vmul.f32 %v994, 1.442695
      %v996 = vpow.pop %v995
      %v997 = vadd.f32 %v993, %v996
      %v998 = vsub.f32 -2.7725887, %v982
      %v999 = vlog2.pop %v997
      %v1000 = vmul.f32 %v999, 0.6931472
      %v1001 = vsub.f32 %v998, %v1000
      %v1002 = vadd.f32 %v1001, %v58
      %v1003 = vsub.f32 %v1002, %v62
      %v1004 = vsel %vm90, %v1003, -inf
      %1005 = vmax.xlane.f32.xlu0 %v1004
      %v1006 = vpop.xlane.xlu0 %1005
      %v1007 = vsub.f32 %v1003, %v1006
      %v1008 = vmul.f32 %v1007, 1.442695
      %v1009 = vpow.pop %v1008
      %v1010 = vsel %vm90, %v1009, 0.0
      %1011 = vadd.xlane.f32.xlu0 %v1010
      %v1012 = vpop.xlane.xlu0 %1011
      %v1013 = vsub.f32 -2.7725887, %v1006
      %v1014 = vlog2.pop %v1012
      %v1015 = vmul.f32 %v1014, 0.6931472
      %v1016 = vsub.f32 %v1013, %v1015
      %v1017 = vsub.f32 %v1002, %v65
      %v1018 = vsel %vm90, %v1017, -inf
      %1019 = vmax.xlane.f32.xlu0 %v1018
      %v1020 = vpop.xlane.xlu0 %1019
      %v1021 = vsub.f32 %v1017, %v1020
      %v1022 = vmul.f32 %v1021, 1.442695
      %v1023 = vpow.pop %v1022
      %v1024 = vsel %vm90, %v1023, 0.0
      %1025 = vadd.xlane.f32.xlu0 %v1024
      %v1026 = vpop.xlane.xlu0 %1025
      %v1027 = vsub.f32 -2.7725887, %v1020
      %v1028 = vlog2.pop %v1026
      %v1029 = vmul.f32 %v1028, 0.6931472
      %v1030 = vsub.f32 %v1027, %v1029
      %v1031 = vsub.f32 %v1002, %v68
      %v1032 = vsel %vm90, %v1031, -inf
      %1033 = vmax.xlane.f32.xlu0 %v1032
      %v1034 = vpop.xlane.xlu0 %1033
      %v1035 = vsub.f32 %v1031, %v1034
      %v1036 = vmul.f32 %v1035, 1.442695
      %v1037 = vpow.pop %v1036
      %v1038 = vsel %vm90, %v1037, 0.0
      %1039 = vadd.xlane.f32.xlu0 %v1038
      %v1040 = vpop.xlane.xlu0 %1039
      %v1041 = vsub.f32 -2.7725887, %v1034
      %v1042 = vlog2.pop %v1040
      %v1043 = vmul.f32 %v1042, 0.6931472
      %v1044 = vsub.f32 %v1041, %v1043
      %v1045 = vsub.f32 %v1002, %v70
      %v1046 = vsel %vm90, %v1045, -inf
      %1047 = vmax.xlane.f32.xlu0 %v1046
      %v1048 = vpop.xlane.xlu0 %1047
      %v1049 = vsub.f32 %v1045, %v1048
      %v1050 = vmul.f32 %v1049, 1.442695
      %v1051 = vpow.pop %v1050
      %v1052 = vsel %vm90, %v1051, 0.0
      %1053 = vadd.xlane.f32.xlu0 %v1052
      %v1054 = vpop.xlane.xlu0 %1053
      %v1055 = vsub.f32 -0.20763937, %v1048
      %v1056 = vlog2.pop %v1054
      %v1057 = vmul.f32 %v1056, 0.6931472
      %v1058 = vsub.f32 %v1055, %v1057
    $region34: #{tpu_custom_call.1} parent=1 // loop_footer
      %s389 = sadd.s32 1, %s385
    $region35: #{tpu_custom_call.1} parent=1 // loop_footer_branch
      %384 = sbr.rel target = $region31
    $region36: #{tpu_custom_call.1} parent=1 // loop_exit
      _
    %v1059 = vadd.f32 %v390, %v391
    %v1060 = vsub.f32 %v1059, %v62
    %v1061 = vmul.f32 %v1060, 1.442695
    %v1062 = vpow.pop %v1061
    %v1063 = vadd.f32 %v390, %v392
    %v1064 = vsub.f32 %v1063, %v65
    %v1065 = vmul.f32 %v1064, 1.442695
    %v1066 = vpow.pop %v1065
    %v1067 = vadd.f32 %v390, %v393
    %v1068 = vsub.f32 %v1067, %v68
    %v1069 = vmul.f32 %v1068, 1.442695
    %v1070 = vpow.pop %v1069
    %v1071 = vadd.f32 %v390, %v394
    %v1072 = vsub.f32 %v1071, %v70
    %v1073 = vmul.f32 %v1072, 1.442695
    %v1074 = vpow.pop %v1073
    %v1075 = vmul.f32 %v1062, 16.0
    %1076 = vst [vmem:[#allocation8] sm:$0x3] %v1075
    %v1077 = vmul.f32 %v1066, 16.0
    %s1078 = scalar_lea.vmem [#allocation8], 2
    %1079 = vst [vmem:[%s1078] sm:$0x3] %v1077
    %v1080 = vmul.f32 %v1070, 16.0
    %s1081 = scalar_lea.vmem [#allocation8], 4
    %1082 = vst [vmem:[%s1081] sm:$0x3] %v1080
    %v1083 = vld [vmem:[%s2] sm:$0x3]
    %1085 = vset.pattern.permute.xlu0 0
    %1086 = vperm.xlu0 %1085, %v1083
    %v1087 = vpop.permute.xlu0 %1086
    %v1089 = vsub.f32 %v1087, %v52
    %v1090 = vand.u32 2147483647, %v1089
    %v1091 = vsub.f32 0.0, %v1090
    %v1092 = vmul.f32 %v1091, %v80
    %v1093 = vxor.u32 %v1092, 2147483648
    %v1094 = vmul.f32 %v1093, 1.442695
    %v1095 = vpow.pop %v1094
    %v1096 = vadd.f32 %v1095, 1.0
    %v1097 = vrcp.pop %v1096
    %v1098 = vmul.f32 1.0, %v1097
    %v1099 = vadd.f32 %v1098, 1e-20
    %v1100 = vmul.f32 %v1099, %v57
    %v1101 = vsel %vm90, %v1100, 0.0
    %1102 = vadd.xlane.f32.xlu0 %v1101
    %v1103 = vpop.xlane.xlu0 %1102
    %v1104 = vrcp.pop %v1103
    %v1105 = vmul.f32 %v1099, %v1104
    %v1106 = vmul.f32 %v1105, 0.0625
    %1107 = vset.pattern.permute.xlu0 1
    %1108 = vperm.xlu0 %1107, %v1083
    %v1109 = vpop.permute.xlu0 %1108
    %v1111 = vsub.f32 %v1109, %v52
    %v1112 = vand.u32 2147483647, %v1111
    %v1113 = vsub.f32 0.0, %v1112
    %v1114 = vmul.f32 %v1113, %v80
    %v1115 = vxor.u32 %v1114, 2147483648
    %v1116 = vmul.f32 %v1115, 1.442695
    %v1117 = vpow.pop %v1116
    %v1118 = vadd.f32 %v1117, 1.0
    %v1119 = vrcp.pop %v1118
    %v1120 = vmul.f32 1.0, %v1119
    %v1121 = vadd.f32 %v1120, 1e-20
    %v1122 = vmul.f32 %v1121, %v57
    %v1123 = vsel %vm90, %v1122, 0.0
    %1124 = vadd.xlane.f32.xlu0 %v1123
    %v1125 = vpop.xlane.xlu0 %1124
    %v1126 = vrcp.pop %v1125
    %v1127 = vmul.f32 %v1121, %v1126
    %v1128 = vmul.f32 %v1127, 0.0625
    %v1129 = vadd.f32 %v1106, %v1128
    %1130 = vset.pattern.permute.xlu0 2
    %1131 = vperm.xlu0 %1130, %v1083
    %v1132 = vpop.permute.xlu0 %1131
    %v1134 = vsub.f32 %v1132, %v52
    %v1135 = vand.u32 2147483647, %v1134
    %v1136 = vsub.f32 0.0, %v1135
    %v1137 = vmul.f32 %v1136, %v80
    %v1138 = vxor.u32 %v1137, 2147483648
    %v1139 = vmul.f32 %v1138, 1.442695
    %v1140 = vpow.pop %v1139
    %v1141 = vadd.f32 %v1140, 1.0
    %v1142 = vrcp.pop %v1141
    %v1143 = vmul.f32 1.0, %v1142
    %v1144 = vadd.f32 %v1143, 1e-20
    %v1145 = vmul.f32 %v1144, %v57
    %v1146 = vsel %vm90, %v1145, 0.0
    %1147 = vadd.xlane.f32.xlu0 %v1146
    %v1148 = vpop.xlane.xlu0 %1147
    %v1149 = vrcp.pop %v1148
    %v1150 = vmul.f32 %v1144, %v1149
    %v1151 = vmul.f32 %v1150, 0.0625
    %v1152 = vadd.f32 %v1129, %v1151
    %v1153 = vsub.f32 0.0625, %v1152
    %v1154 = vmax.f32 %v1153, 1e-20
    %v1155 = vmin.f32 %v1154, 1.0
    %v1156 = vsub.f32 %v1062, %v1106
    %v1157 = vmul.f32 %v1156, %v57
    %v1158 = vmul.f32 %v1157, %v1157
    %v1159 = vsel %vm90, %v1158, 0.0
    %1160 = vadd.xlane.f32.xlu0 %v1159
    %v1161 = vpop.xlane.xlu0 %1160
    %v1162 = vsub.f32 %v1066, %v1128
    %v1163 = vmul.f32 %v1162, %v57
    %v1164 = vmul.f32 %v1163, %v1163
    %v1165 = vsel %vm90, %v1164, 0.0
    %1166 = vadd.xlane.f32.xlu0 %v1165
    %v1167 = vpop.xlane.xlu0 %1166
    %v1168 = vadd.f32 %v1161, %v1167
    %v1169 = vsub.f32 %v1070, %v1151
    %v1170 = vmul.f32 %v1169, %v57
    %v1171 = vmul.f32 %v1170, %v1170
    %v1172 = vsel %vm90, %v1171, 0.0
    %1173 = vadd.xlane.f32.xlu0 %v1172
    %v1174 = vpop.xlane.xlu0 %1173
    %v1175 = vadd.f32 %v1168, %v1174
    %v1176 = vsub.f32 %v1074, %v1155
    %v1177 = vmul.f32 %v1176, %v57
    %v1178 = vmul.f32 %v1177, %v1177
    %v1179 = vsel %vm90, %v1178, 0.0
    %1180 = vadd.xlane.f32.xlu0 %v1179
    %v1181 = vpop.xlane.xlu0 %1180
    %v1182 = vadd.f32 %v1175, %v1181
    %vm1183 = vcmask 1024
    %1184 = vst.msk [vmem:[%s6] sm:$0x3] %vm1183, %v1182
    // Predicated region
    $region37: #{tpu_custom_call.1} parent=1 // pred_check
      _
    $region38: #{tpu_custom_call.1} parent=1 // pred_check_branch
      %1186 = sbr.rel (0) target = $region40
    $region39: #{tpu_custom_call.1} parent=1 // pred_region
      %s1188 = ssub.s32 96, 96
      %1189 = vsyncadd [#allocation5], %s1188
      %s1190 = sshll.u32 [#allocation8], 4
      %s1191 = int_to_ptr.vmem [resolvable:$true] %s1190
      %1196 = dma.vmem_to_hbm [thread:$0]  %s1191, 96, %s5, [#allocation5], 32, 32, 2
    $region40: #{tpu_custom_call.1} parent=1 // pred_fallthru
      _
    // Predicated region
    $region41: #{tpu_custom_call.1} parent=1 // pred_check
      _
    $region42: #{tpu_custom_call.1} parent=1 // pred_check_branch
      %1198 = sbr.rel (0) target = $region44
    $region43: #{tpu_custom_call.1} parent=1 // pred_region
      _
    $region44: #{tpu_custom_call.1} parent=1 // pred_fallthru
      _
    // Predicated region
    $region45: #{tpu_custom_call.1} parent=1 // pred_check
      _
    $region46: #{tpu_custom_call.1} parent=1 // pred_check_branch
      %1200 = sbr.rel (0) target = $region48
    $region47: #{tpu_custom_call.1} parent=1 // pred_region
      %1201 = dma.done [#allocation5], 96
    $region48: #{tpu_custom_call.1} parent=1 // pred_fallthru
      _
    // Predicated region
    $region49: #{tpu_custom_call.1} parent=1 // pred_check
      _
    $region50: #{tpu_custom_call.1} parent=1 // pred_check_branch
      %1203 = sbr.rel (0) target = $region52
    $region51: #{tpu_custom_call.1} parent=1 // pred_region
      _
    $region52: #{tpu_custom_call.1} parent=1 // pred_fallthru
      _
    %1204 = vsyncpa [#allocation4], 1
    %1205 = vsyncpa [#allocation5], 1
    %1206 = vsyncpa [#allocation6], 1

</llo_original>
